<compile_context>
chip_gen: v7x
topology: tpu7x:2x2x1
jax: 0.10.0
libtpu: 0.0.40
codegen_flags: <defaults>
</compile_context>

<pallas_src>
import functools

import jax
import jax.numpy as jnp
from jax.experimental import pallas as pl
from jax.experimental.pallas import tpu as pltpu


def _decoder_seq_kernel(h0_ref, x_ref, wih_ref, whh_ref, bih_ref, bhh_ref,
                        wtp_ref, btp_ref, y_out_ref, h_out_ref,
                        *, seq_len, hidden):
    """Whole decode sequence in one kernel invocation (no grid).

    Inputs, weights and outputs are VMEM-resident for the duration of the call;
    the recurrence is a fully unrolled in-body loop with the hidden state
    carried in vregs (the fori_loop carry)."""
    H = hidden
    B = h0_ref.shape[0]

    # ---- Loop-invariant hoists (loop is unrolled; JAX does not CSE these). ----
    w_ih = wih_ref[...]                                    # (I, 3H)
    w_hh = whh_ref[...]                                    # (H, 3H)
    w_tp = wtp_ref[...]                                    # (H, I)
    b_ih = jnp.broadcast_to(bih_ref[...], (B, 3 * H))      # (B, 3H)
    b_hh = jnp.broadcast_to(bhh_ref[...], (B, 3 * H))      # (B, 3H)
    b_tp = jnp.broadcast_to(btp_ref[...], (B, wtp_ref.shape[-1]))   # (B, I)

    def step(t, h):
        x = x_ref[t].astype(jnp.float32)                   # (B, I) current input

        # Two single-pass MXU matmuls (no [x|h] concat, no block-diag weight).
        gi = jnp.dot(x, w_ih, preferred_element_type=jnp.float32) + b_ih   # (B, 3H)
        gh = jnp.dot(h, w_hh, preferred_element_type=jnp.float32) + b_hh   # (B, 3H)

        # PyTorch GRUCell gate order: [reset, update, new].
        # sigmoid taken full gate width (the unused n lanes are free on the EUP);
        # only three non-128-aligned slices remain per step (z, gi_n, gh_n).
        rz = jax.nn.sigmoid(gi + gh)
        r = rz[:, 0 * H:1 * H]
        z = rz[:, 1 * H:2 * H]
        n = jnp.tanh(gi[:, 2 * H:3 * H] + r * gh[:, 2 * H:3 * H])
        h_n = (1.0 - z) * n + z * h                        # (B, H)

        # tp = Linear(hidden -> pose+traj); residual add with x.
        y = x + jnp.dot(h_n, w_tp, preferred_element_type=jnp.float32) + b_tp

        y_out_ref[t] = y.astype(y_out_ref.dtype)
        h_out_ref[t] = h_n.astype(h_out_ref.dtype)
        return h_n

    jax.lax.fori_loop(0, seq_len, step, h0_ref[...].astype(jnp.float32),
                      unroll=True)


@jax.jit
def decoder_cell_sequence(x_seq, h0, params):
    """Run T fused decoder steps.

    x_seq: (T, B, pose+traj), h0: (B, hidden).
    Returns (y_seq (T, B, pose+traj), h_seq (T, B, hidden))."""
    T, B, I = x_seq.shape
    H = h0.shape[-1]
    w_ih, w_hh, b_ih, b_hh, w_tp, b_tp = params

    vmem = lambda: pl.BlockSpec(memory_space=pltpu.MemorySpace.VMEM)

    y_seq, h_seq = pl.pallas_call(
        functools.partial(_decoder_seq_kernel, seq_len=T, hidden=H),
        out_shape=(jax.ShapeDtypeStruct((T, B, I), x_seq.dtype),
                   jax.ShapeDtypeStruct((T, B, H), h0.dtype)),
        in_specs=[vmem() for _ in range(8)],
        out_specs=(vmem(), vmem()),
    )(h0, x_seq, w_ih, w_hh, b_ih, b_hh, w_tp, b_tp)
    return y_seq, h_seq


def decoder_cell(x, h, params):
    """Single-step DecoderCell.forward(x, h) -> (y, h_n), via the fused kernel (T=1)."""
    y_seq, h_seq = decoder_cell_sequence(x[None], h, params)
    return y_seq[0], h_seq[0]


def init_params(key, pose_size, trajectory_size, hidden_size):
    """Deterministic synthetic parameters with the same shapes as the PyTorch module
    (weights stored transposed: (in, out))."""
    I = pose_size + trajectory_size
    H = hidden_size
    ks = jax.random.split(key, 6)
    scale = 0.1
    w_ih = scale * jax.random.normal(ks[0], (I, 3 * H), jnp.float32)   # GRU weight_ih^T
    w_hh = scale * jax.random.normal(ks[1], (H, 3 * H), jnp.float32)   # GRU weight_hh^T
    b_ih = scale * jax.random.normal(ks[2], (1, 3 * H), jnp.float32)
    b_hh = scale * jax.random.normal(ks[3], (1, 3 * H), jnp.float32)
    w_tp = scale * jax.random.normal(ks[4], (H, I), jnp.float32)       # tp Linear weight^T
    b_tp = scale * jax.random.normal(ks[5], (1, I), jnp.float32)
    return (w_ih, w_hh, b_ih, b_hh, w_tp, b_tp)


def decoder_cell_ref(x, h, params):
    """Pure-JAX single-step reference."""
    w_ih, w_hh, b_ih, b_hh, w_tp, b_tp = params
    H = h.shape[-1]
    gi = x @ w_ih + b_ih
    gh = h @ w_hh + b_hh
    r = jax.nn.sigmoid(gi[:, :H] + gh[:, :H])
    z = jax.nn.sigmoid(gi[:, H:2 * H] + gh[:, H:2 * H])
    n = jnp.tanh(gi[:, 2 * H:] + r * gh[:, 2 * H:])
    h_n = (1.0 - z) * n + z * h
    y = x + (h_n @ w_tp + b_tp)
    return y, h_n


def decoder_cell_sequence_ref(x_seq, h0, params):
    """Pure-JAX scan reference for the fused T-step kernel."""
    def step(h, x):
        y, h_n = decoder_cell_ref(x, h, params)
        return h_n, (y, h_n)
    _, (ys, hs) = jax.lax.scan(step, h0, x_seq)
    return ys, hs


if __name__ == "__main__":
    # Small shapes consistent with the module's forward:
    #   T=8 decode steps, batch=8, hidden=32, pose_size=48, trajectory_size=16
    #   -> x feature dim = 64
    T = 8
    batch = 8
    hidden_size = 32
    pose_size = 48
    trajectory_size = 16
    feat = pose_size + trajectory_size

    key = jax.random.PRNGKey(0)
    kx, kh, kp = jax.random.split(key, 3)
    x_seq = jax.random.normal(kx, (T, batch, feat), jnp.float32)
    h0 = jax.random.normal(kh, (batch, hidden_size), jnp.float32)
    params = init_params(kp, pose_size, trajectory_size, hidden_size)

    # Fused multi-step kernel (time loop inside the kernel body; single pallas_call).
    y_seq, h_seq = decoder_cell_sequence(x_seq, h0, params)
    jax.block_until_ready((y_seq, h_seq))

    y_seq_ref, h_seq_ref = decoder_cell_sequence_ref(x_seq, h0, params)
    assert jnp.allclose(y_seq, y_seq_ref, atol=1e-4), "sequence y mismatch vs reference"
    assert jnp.allclose(h_seq, h_seq_ref, atol=1e-4), "sequence h mismatch vs reference"

    # Single-step path (matches DecoderCell.forward(x, h) exactly).
    y1, h1 = decoder_cell(x_seq[0], h0, params)
    jax.block_until_ready((y1, h1))
    y1_ref, h1_ref = decoder_cell_ref(x_seq[0], h0, params)
    assert jnp.allclose(y1, y1_ref, atol=1e-4), "single-step y mismatch vs reference"
    assert jnp.allclose(h1, h1_ref, atol=1e-4), "single-step h_n mismatch vs reference"

    print("KERNEL_OK")
</pallas_src>

<mosaic_0001>
module attributes {stable_mosaic.version = 11 : i64} {
  func.func @_decoder_seq_kernel(%arg0: memref<8x32xf32, #tpu.memory_space<vmem>>, %arg1: memref<8x8x64xf32, #tpu.memory_space<vmem>>, %arg2: memref<64x96xf32, #tpu.memory_space<vmem>>, %arg3: memref<32x96xf32, #tpu.memory_space<vmem>>, %arg4: memref<1x96xf32, #tpu.memory_space<vmem>>, %arg5: memref<1x96xf32, #tpu.memory_space<vmem>>, %arg6: memref<32x64xf32, #tpu.memory_space<vmem>>, %arg7: memref<1x64xf32, #tpu.memory_space<vmem>>, %arg8: memref<8x8x64xf32, #tpu.memory_space<vmem>>, %arg9: memref<8x8x32xf32, #tpu.memory_space<vmem>>) attributes {dimension_semantics = [], scalar_prefetch = 0 : i64, scratch_operands = 0 : i64, tpu.core_type = #tpu.core_type<tc>} {
    %c0 = arith.constant 0 : index
    %c0_0 = arith.constant 0 : index
    %0 = vector.load %arg2[%c0, %c0_0] : memref<64x96xf32, #tpu.memory_space<vmem>>, vector<64x96xf32>
    %c0_1 = arith.constant 0 : index
    %c0_2 = arith.constant 0 : index
    %1 = vector.load %arg3[%c0_1, %c0_2] : memref<32x96xf32, #tpu.memory_space<vmem>>, vector<32x96xf32>
    %c0_3 = arith.constant 0 : index
    %c0_4 = arith.constant 0 : index
    %2 = vector.load %arg6[%c0_3, %c0_4] : memref<32x64xf32, #tpu.memory_space<vmem>>, vector<32x64xf32>
    %c0_5 = arith.constant 0 : index
    %c0_6 = arith.constant 0 : index
    %3 = vector.load %arg4[%c0_5, %c0_6] : memref<1x96xf32, #tpu.memory_space<vmem>>, vector<1x96xf32>
    %4 = vector.shape_cast %3 : vector<1x96xf32> to vector<1x96xf32>
    %5 = vector.broadcast %4 : vector<1x96xf32> to vector<8x96xf32>
    %c0_7 = arith.constant 0 : index
    %c0_8 = arith.constant 0 : index
    %6 = vector.load %arg5[%c0_7, %c0_8] : memref<1x96xf32, #tpu.memory_space<vmem>>, vector<1x96xf32>
    %7 = vector.shape_cast %6 : vector<1x96xf32> to vector<1x96xf32>
    %8 = vector.broadcast %7 : vector<1x96xf32> to vector<8x96xf32>
    %c0_9 = arith.constant 0 : index
    %c0_10 = arith.constant 0 : index
    %9 = vector.load %arg7[%c0_9, %c0_10] : memref<1x64xf32, #tpu.memory_space<vmem>>, vector<1x64xf32>
    %10 = vector.shape_cast %9 : vector<1x64xf32> to vector<1x64xf32>
    %11 = vector.broadcast %10 : vector<1x64xf32> to vector<8x64xf32>
    %c0_11 = arith.constant 0 : index
    %c0_12 = arith.constant 0 : index
    %12 = vector.load %arg0[%c0_11, %c0_12] : memref<8x32xf32, #tpu.memory_space<vmem>>, vector<8x32xf32>
    %c0_i32 = arith.constant 0 : i32
    %13 = arith.index_cast %c0_i32 : i32 to index
    %c0_13 = arith.constant 0 : index
    %c0_14 = arith.constant 0 : index
    %14 = vector.load %arg1[%13, %c0_13, %c0_14] : memref<8x8x64xf32, #tpu.memory_space<vmem>>, vector<1x8x64xf32>
    %15 = vector.shape_cast %14 : vector<1x8x64xf32> to vector<8x64xf32>
    %cst = arith.constant dense<0.000000e+00> : vector<8x96xf32>
    %16 = tpu.matmul %15, %0, %cst {dimension_numbers = #tpu.dot_dimension_numbers<[1], [0], [0], [1], [0, 0, 1, 1], [], []>} : vector<8x64xf32>, vector<64x96xf32>, vector<8x96xf32> -> vector<8x96xf32>
    %17 = arith.addf %16, %5 : vector<8x96xf32>
    %cst_15 = arith.constant dense<0.000000e+00> : vector<8x96xf32>
    %18 = tpu.matmul %12, %1, %cst_15 {dimension_numbers = #tpu.dot_dimension_numbers<[1], [0], [0], [1], [0, 0, 1, 1], [], []>} : vector<8x32xf32>, vector<32x96xf32>, vector<8x96xf32> -> vector<8x96xf32>
    %19 = arith.addf %18, %8 : vector<8x96xf32>
    %20 = arith.addf %17, %19 : vector<8x96xf32>
    %21 = arith.negf %20 : vector<8x96xf32>
    %22 = math.exp %21 : vector<8x96xf32>
    %cst_16 = arith.constant 1.000000e+00 : f32
    %23 = vector.broadcast %cst_16 : f32 to vector<8x96xf32>
    %24 = arith.addf %23, %22 : vector<8x96xf32>
    %25 = arith.divf %23, %24 : vector<8x96xf32>
    %26 = vector.extract_strided_slice %25 {offsets = [0, 0], sizes = [8, 32], strides = [1, 1]} : vector<8x96xf32> to vector<8x32xf32>
    %27 = vector.extract_strided_slice %25 {offsets = [0, 32], sizes = [8, 32], strides = [1, 1]} : vector<8x96xf32> to vector<8x32xf32>
    %28 = vector.extract_strided_slice %17 {offsets = [0, 64], sizes = [8, 32], strides = [1, 1]} : vector<8x96xf32> to vector<8x32xf32>
    %29 = vector.extract_strided_slice %19 {offsets = [0, 64], sizes = [8, 32], strides = [1, 1]} : vector<8x96xf32> to vector<8x32xf32>
    %30 = arith.mulf %26, %29 : vector<8x32xf32>
    %31 = arith.addf %28, %30 : vector<8x32xf32>
    %32 = math.tanh %31 : vector<8x32xf32>
    %cst_17 = arith.constant 1.000000e+00 : f32
    %33 = vector.broadcast %cst_17 : f32 to vector<8x32xf32>
    %34 = arith.subf %33, %27 : vector<8x32xf32>
    %35 = arith.mulf %34, %32 : vector<8x32xf32>
    %36 = arith.mulf %27, %12 : vector<8x32xf32>
    %37 = arith.addf %35, %36 : vector<8x32xf32>
    %cst_18 = arith.constant dense<0.000000e+00> : vector<8x64xf32>
    %38 = tpu.matmul %37, %2, %cst_18 {dimension_numbers = #tpu.dot_dimension_numbers<[1], [0], [0], [1], [0, 0, 1, 1], [], []>} : vector<8x32xf32>, vector<32x64xf32>, vector<8x64xf32> -> vector<8x64xf32>
    %39 = arith.addf %15, %38 : vector<8x64xf32>
    %40 = arith.addf %39, %11 : vector<8x64xf32>
    %41 = arith.index_cast %c0_i32 : i32 to index
    %c0_19 = arith.constant 0 : index
    %c0_20 = arith.constant 0 : index
    %42 = vector.load %arg8[%41, %c0_19, %c0_20] : memref<8x8x64xf32, #tpu.memory_space<vmem>>, vector<1x8x64xf32>
    %43 = vector.shape_cast %42 : vector<1x8x64xf32> to vector<8x64xf32>
    %44 = vector.shape_cast %40 : vector<8x64xf32> to vector<1x8x64xf32>
    tpu.vector_store %arg8[%41, %c0_19, %c0_20], %44 {strides = array<i32>} : memref<8x8x64xf32, #tpu.memory_space<vmem>>, vector<1x8x64xf32>,
    %45 = arith.index_cast %c0_i32 : i32 to index
    %c0_21 = arith.constant 0 : index
    %c0_22 = arith.constant 0 : index
    %46 = vector.load %arg9[%45, %c0_21, %c0_22] : memref<8x8x32xf32, #tpu.memory_space<vmem>>, vector<1x8x32xf32>
    %47 = vector.shape_cast %46 : vector<1x8x32xf32> to vector<8x32xf32>
    %48 = vector.shape_cast %37 : vector<8x32xf32> to vector<1x8x32xf32>
    tpu.vector_store %arg9[%45, %c0_21, %c0_22], %48 {strides = array<i32>} : memref<8x8x32xf32, #tpu.memory_space<vmem>>, vector<1x8x32xf32>,
    %c1_i32 = arith.constant 1 : i32
    %49 = arith.index_cast %c1_i32 : i32 to index
    %c0_23 = arith.constant 0 : index
    %c0_24 = arith.constant 0 : index
    %50 = vector.load %arg1[%49, %c0_23, %c0_24] : memref<8x8x64xf32, #tpu.memory_space<vmem>>, vector<1x8x64xf32>
    %51 = vector.shape_cast %50 : vector<1x8x64xf32> to vector<8x64xf32>
    %cst_25 = arith.constant dense<0.000000e+00> : vector<8x96xf32>
    %52 = tpu.matmul %51, %0, %cst_25 {dimension_numbers = #tpu.dot_dimension_numbers<[1], [0], [0], [1], [0, 0, 1, 1], [], []>} : vector<8x64xf32>, vector<64x96xf32>, vector<8x96xf32> -> vector<8x96xf32>
    %53 = arith.addf %52, %5 : vector<8x96xf32>
    %cst_26 = arith.constant dense<0.000000e+00> : vector<8x96xf32>
    %54 = tpu.matmul %37, %1, %cst_26 {dimension_numbers = #tpu.dot_dimension_numbers<[1], [0], [0], [1], [0, 0, 1, 1], [], []>} : vector<8x32xf32>, vector<32x96xf32>, vector<8x96xf32> -> vector<8x96xf32>
    %55 = arith.addf %54, %8 : vector<8x96xf32>
    %56 = arith.addf %53, %55 : vector<8x96xf32>
    %57 = arith.negf %56 : vector<8x96xf32>
    %58 = math.exp %57 : vector<8x96xf32>
    %cst_27 = arith.constant 1.000000e+00 : f32
    %59 = vector.broadcast %cst_27 : f32 to vector<8x96xf32>
    %60 = arith.addf %59, %58 : vector<8x96xf32>
    %61 = arith.divf %59, %60 : vector<8x96xf32>
    %62 = vector.extract_strided_slice %61 {offsets = [0, 0], sizes = [8, 32], strides = [1, 1]} : vector<8x96xf32> to vector<8x32xf32>
    %63 = vector.extract_strided_slice %61 {offsets = [0, 32], sizes = [8, 32], strides = [1, 1]} : vector<8x96xf32> to vector<8x32xf32>
    %64 = vector.extract_strided_slice %53 {offsets = [0, 64], sizes = [8, 32], strides = [1, 1]} : vector<8x96xf32> to vector<8x32xf32>
    %65 = vector.extract_strided_slice %55 {offsets = [0, 64], sizes = [8, 32], strides = [1, 1]} : vector<8x96xf32> to vector<8x32xf32>
    %66 = arith.mulf %62, %65 : vector<8x32xf32>
    %67 = arith.addf %64, %66 : vector<8x32xf32>
    %68 = math.tanh %67 : vector<8x32xf32>
    %cst_28 = arith.constant 1.000000e+00 : f32
    %69 = vector.broadcast %cst_28 : f32 to vector<8x32xf32>
    %70 = arith.subf %69, %63 : vector<8x32xf32>
    %71 = arith.mulf %70, %68 : vector<8x32xf32>
    %72 = arith.mulf %63, %37 : vector<8x32xf32>
    %73 = arith.addf %71, %72 : vector<8x32xf32>
    %cst_29 = arith.constant dense<0.000000e+00> : vector<8x64xf32>
    %74 = tpu.matmul %73, %2, %cst_29 {dimension_numbers = #tpu.dot_dimension_numbers<[1], [0], [0], [1], [0, 0, 1, 1], [], []>} : vector<8x32xf32>, vector<32x64xf32>, vector<8x64xf32> -> vector<8x64xf32>
    %75 = arith.addf %51, %74 : vector<8x64xf32>
    %76 = arith.addf %75, %11 : vector<8x64xf32>
    %77 = arith.index_cast %c1_i32 : i32 to index
    %c0_30 = arith.constant 0 : index
    %c0_31 = arith.constant 0 : index
    %78 = vector.load %arg8[%77, %c0_30, %c0_31] : memref<8x8x64xf32, #tpu.memory_space<vmem>>, vector<1x8x64xf32>
    %79 = vector.shape_cast %78 : vector<1x8x64xf32> to vector<8x64xf32>
    %80 = vector.shape_cast %76 : vector<8x64xf32> to vector<1x8x64xf32>
    tpu.vector_store %arg8[%77, %c0_30, %c0_31], %80 {strides = array<i32>} : memref<8x8x64xf32, #tpu.memory_space<vmem>>, vector<1x8x64xf32>,
    %81 = arith.index_cast %c1_i32 : i32 to index
    %c0_32 = arith.constant 0 : index
    %c0_33 = arith.constant 0 : index
    %82 = vector.load %arg9[%81, %c0_32, %c0_33] : memref<8x8x32xf32, #tpu.memory_space<vmem>>, vector<1x8x32xf32>
    %83 = vector.shape_cast %82 : vector<1x8x32xf32> to vector<8x32xf32>
    %84 = vector.shape_cast %73 : vector<8x32xf32> to vector<1x8x32xf32>
    tpu.vector_store %arg9[%81, %c0_32, %c0_33], %84 {strides = array<i32>} : memref<8x8x32xf32, #tpu.memory_space<vmem>>, vector<1x8x32xf32>,
    %c2_i32 = arith.constant 2 : i32
    %85 = arith.index_cast %c2_i32 : i32 to index
    %c0_34 = arith.constant 0 : index
    %c0_35 = arith.constant 0 : index
    %86 = vector.load %arg1[%85, %c0_34, %c0_35] : memref<8x8x64xf32, #tpu.memory_space<vmem>>, vector<1x8x64xf32>
    %87 = vector.shape_cast %86 : vector<1x8x64xf32> to vector<8x64xf32>
    %cst_36 = arith.constant dense<0.000000e+00> : vector<8x96xf32>
    %88 = tpu.matmul %87, %0, %cst_36 {dimension_numbers = #tpu.dot_dimension_numbers<[1], [0], [0], [1], [0, 0, 1, 1], [], []>} : vector<8x64xf32>, vector<64x96xf32>, vector<8x96xf32> -> vector<8x96xf32>
    %89 = arith.addf %88, %5 : vector<8x96xf32>
    %cst_37 = arith.constant dense<0.000000e+00> : vector<8x96xf32>
    %90 = tpu.matmul %73, %1, %cst_37 {dimension_numbers = #tpu.dot_dimension_numbers<[1], [0], [0], [1], [0, 0, 1, 1], [], []>} : vector<8x32xf32>, vector<32x96xf32>, vector<8x96xf32> -> vector<8x96xf32>
    %91 = arith.addf %90, %8 : vector<8x96xf32>
    %92 = arith.addf %89, %91 : vector<8x96xf32>
    %93 = arith.negf %92 : vector<8x96xf32>
    %94 = math.exp %93 : vector<8x96xf32>
    %cst_38 = arith.constant 1.000000e+00 : f32
    %95 = vector.broadcast %cst_38 : f32 to vector<8x96xf32>
    %96 = arith.addf %95, %94 : vector<8x96xf32>
    %97 = arith.divf %95, %96 : vector<8x96xf32>
    %98 = vector.extract_strided_slice %97 {offsets = [0, 0], sizes = [8, 32], strides = [1, 1]} : vector<8x96xf32> to vector<8x32xf32>
    %99 = vector.extract_strided_slice %97 {offsets = [0, 32], sizes = [8, 32], strides = [1, 1]} : vector<8x96xf32> to vector<8x32xf32>
    %100 = vector.extract_strided_slice %89 {offsets = [0, 64], sizes = [8, 32], strides = [1, 1]} : vector<8x96xf32> to vector<8x32xf32>
    %101 = vector.extract_strided_slice %91 {offsets = [0, 64], sizes = [8, 32], strides = [1, 1]} : vector<8x96xf32> to vector<8x32xf32>
    %102 = arith.mulf %98, %101 : vector<8x32xf32>
    %103 = arith.addf %100, %102 : vector<8x32xf32>
    %104 = math.tanh %103 : vector<8x32xf32>
    %cst_39 = arith.constant 1.000000e+00 : f32
    %105 = vector.broadcast %cst_39 : f32 to vector<8x32xf32>
    %106 = arith.subf %105, %99 : vector<8x32xf32>
    %107 = arith.mulf %106, %104 : vector<8x32xf32>
    %108 = arith.mulf %99, %73 : vector<8x32xf32>
    %109 = arith.addf %107, %108 : vector<8x32xf32>
    %cst_40 = arith.constant dense<0.000000e+00> : vector<8x64xf32>
    %110 = tpu.matmul %109, %2, %cst_40 {dimension_numbers = #tpu.dot_dimension_numbers<[1], [0], [0], [1], [0, 0, 1, 1], [], []>} : vector<8x32xf32>, vector<32x64xf32>, vector<8x64xf32> -> vector<8x64xf32>
    %111 = arith.addf %87, %110 : vector<8x64xf32>
    %112 = arith.addf %111, %11 : vector<8x64xf32>
    %113 = arith.index_cast %c2_i32 : i32 to index
    %c0_41 = arith.constant 0 : index
    %c0_42 = arith.constant 0 : index
    %114 = vector.load %arg8[%113, %c0_41, %c0_42] : memref<8x8x64xf32, #tpu.memory_space<vmem>>, vector<1x8x64xf32>
    %115 = vector.shape_cast %114 : vector<1x8x64xf32> to vector<8x64xf32>
    %116 = vector.shape_cast %112 : vector<8x64xf32> to vector<1x8x64xf32>
    tpu.vector_store %arg8[%113, %c0_41, %c0_42], %116 {strides = array<i32>} : memref<8x8x64xf32, #tpu.memory_space<vmem>>, vector<1x8x64xf32>,
    %117 = arith.index_cast %c2_i32 : i32 to index
    %c0_43 = arith.constant 0 : index
    %c0_44 = arith.constant 0 : index
    %118 = vector.load %arg9[%117, %c0_43, %c0_44] : memref<8x8x32xf32, #tpu.memory_space<vmem>>, vector<1x8x32xf32>
    %119 = vector.shape_cast %118 : vector<1x8x32xf32> to vector<8x32xf32>
    %120 = vector.shape_cast %109 : vector<8x32xf32> to vector<1x8x32xf32>
    tpu.vector_store %arg9[%117, %c0_43, %c0_44], %120 {strides = array<i32>} : memref<8x8x32xf32, #tpu.memory_space<vmem>>, vector<1x8x32xf32>,
    %c3_i32 = arith.constant 3 : i32
    %121 = arith.index_cast %c3_i32 : i32 to index
    %c0_45 = arith.constant 0 : index
    %c0_46 = arith.constant 0 : index
    %122 = vector.load %arg1[%121, %c0_45, %c0_46] : memref<8x8x64xf32, #tpu.memory_space<vmem>>, vector<1x8x64xf32>
    %123 = vector.shape_cast %122 : vector<1x8x64xf32> to vector<8x64xf32>
    %cst_47 = arith.constant dense<0.000000e+00> : vector<8x96xf32>
    %124 = tpu.matmul %123, %0, %cst_47 {dimension_numbers = #tpu.dot_dimension_numbers<[1], [0], [0], [1], [0, 0, 1, 1], [], []>} : vector<8x64xf32>, vector<64x96xf32>, vector<8x96xf32> -> vector<8x96xf32>
    %125 = arith.addf %124, %5 : vector<8x96xf32>
    %cst_48 = arith.constant dense<0.000000e+00> : vector<8x96xf32>
    %126 = tpu.matmul %109, %1, %cst_48 {dimension_numbers = #tpu.dot_dimension_numbers<[1], [0], [0], [1], [0, 0, 1, 1], [], []>} : vector<8x32xf32>, vector<32x96xf32>, vector<8x96xf32> -> vector<8x96xf32>
    %127 = arith.addf %126, %8 : vector<8x96xf32>
    %128 = arith.addf %125, %127 : vector<8x96xf32>
    %129 = arith.negf %128 : vector<8x96xf32>
    %130 = math.exp %129 : vector<8x96xf32>
    %cst_49 = arith.constant 1.000000e+00 : f32
    %131 = vector.broadcast %cst_49 : f32 to vector<8x96xf32>
    %132 = arith.addf %131, %130 : vector<8x96xf32>
    %133 = arith.divf %131, %132 : vector<8x96xf32>
    %134 = vector.extract_strided_slice %133 {offsets = [0, 0], sizes = [8, 32], strides = [1, 1]} : vector<8x96xf32> to vector<8x32xf32>
    %135 = vector.extract_strided_slice %133 {offsets = [0, 32], sizes = [8, 32], strides = [1, 1]} : vector<8x96xf32> to vector<8x32xf32>
    %136 = vector.extract_strided_slice %125 {offsets = [0, 64], sizes = [8, 32], strides = [1, 1]} : vector<8x96xf32> to vector<8x32xf32>
    %137 = vector.extract_strided_slice %127 {offsets = [0, 64], sizes = [8, 32], strides = [1, 1]} : vector<8x96xf32> to vector<8x32xf32>
    %138 = arith.mulf %134, %137 : vector<8x32xf32>
    %139 = arith.addf %136, %138 : vector<8x32xf32>
    %140 = math.tanh %139 : vector<8x32xf32>
    %cst_50 = arith.constant 1.000000e+00 : f32
    %141 = vector.broadcast %cst_50 : f32 to vector<8x32xf32>
    %142 = arith.subf %141, %135 : vector<8x32xf32>
    %143 = arith.mulf %142, %140 : vector<8x32xf32>
    %144 = arith.mulf %135, %109 : vector<8x32xf32>
    %145 = arith.addf %143, %144 : vector<8x32xf32>
    %cst_51 = arith.constant dense<0.000000e+00> : vector<8x64xf32>
    %146 = tpu.matmul %145, %2, %cst_51 {dimension_numbers = #tpu.dot_dimension_numbers<[1], [0], [0], [1], [0, 0, 1, 1], [], []>} : vector<8x32xf32>, vector<32x64xf32>, vector<8x64xf32> -> vector<8x64xf32>
    %147 = arith.addf %123, %146 : vector<8x64xf32>
    %148 = arith.addf %147, %11 : vector<8x64xf32>
    %149 = arith.index_cast %c3_i32 : i32 to index
    %c0_52 = arith.constant 0 : index
    %c0_53 = arith.constant 0 : index
    %150 = vector.load %arg8[%149, %c0_52, %c0_53] : memref<8x8x64xf32, #tpu.memory_space<vmem>>, vector<1x8x64xf32>
    %151 = vector.shape_cast %150 : vector<1x8x64xf32> to vector<8x64xf32>
    %152 = vector.shape_cast %148 : vector<8x64xf32> to vector<1x8x64xf32>
    tpu.vector_store %arg8[%149, %c0_52, %c0_53], %152 {strides = array<i32>} : memref<8x8x64xf32, #tpu.memory_space<vmem>>, vector<1x8x64xf32>,
    %153 = arith.index_cast %c3_i32 : i32 to index
    %c0_54 = arith.constant 0 : index
    %c0_55 = arith.constant 0 : index
    %154 = vector.load %arg9[%153, %c0_54, %c0_55] : memref<8x8x32xf32, #tpu.memory_space<vmem>>, vector<1x8x32xf32>
    %155 = vector.shape_cast %154 : vector<1x8x32xf32> to vector<8x32xf32>
    %156 = vector.shape_cast %145 : vector<8x32xf32> to vector<1x8x32xf32>
    tpu.vector_store %arg9[%153, %c0_54, %c0_55], %156 {strides = array<i32>} : memref<8x8x32xf32, #tpu.memory_space<vmem>>, vector<1x8x32xf32>,
    %c4_i32 = arith.constant 4 : i32
    %157 = arith.index_cast %c4_i32 : i32 to index
    %c0_56 = arith.constant 0 : index
    %c0_57 = arith.constant 0 : index
    %158 = vector.load %arg1[%157, %c0_56, %c0_57] : memref<8x8x64xf32, #tpu.memory_space<vmem>>, vector<1x8x64xf32>
    %159 = vector.shape_cast %158 : vector<1x8x64xf32> to vector<8x64xf32>
    %cst_58 = arith.constant dense<0.000000e+00> : vector<8x96xf32>
    %160 = tpu.matmul %159, %0, %cst_58 {dimension_numbers = #tpu.dot_dimension_numbers<[1], [0], [0], [1], [0, 0, 1, 1], [], []>} : vector<8x64xf32>, vector<64x96xf32>, vector<8x96xf32> -> vector<8x96xf32>
    %161 = arith.addf %160, %5 : vector<8x96xf32>
    %cst_59 = arith.constant dense<0.000000e+00> : vector<8x96xf32>
    %162 = tpu.matmul %145, %1, %cst_59 {dimension_numbers = #tpu.dot_dimension_numbers<[1], [0], [0], [1], [0, 0, 1, 1], [], []>} : vector<8x32xf32>, vector<32x96xf32>, vector<8x96xf32> -> vector<8x96xf32>
    %163 = arith.addf %162, %8 : vector<8x96xf32>
    %164 = arith.addf %161, %163 : vector<8x96xf32>
    %165 = arith.negf %164 : vector<8x96xf32>
    %166 = math.exp %165 : vector<8x96xf32>
    %cst_60 = arith.constant 1.000000e+00 : f32
    %167 = vector.broadcast %cst_60 : f32 to vector<8x96xf32>
    %168 = arith.addf %167, %166 : vector<8x96xf32>
    %169 = arith.divf %167, %168 : vector<8x96xf32>
    %170 = vector.extract_strided_slice %169 {offsets = [0, 0], sizes = [8, 32], strides = [1, 1]} : vector<8x96xf32> to vector<8x32xf32>
    %171 = vector.extract_strided_slice %169 {offsets = [0, 32], sizes = [8, 32], strides = [1, 1]} : vector<8x96xf32> to vector<8x32xf32>
    %172 = vector.extract_strided_slice %161 {offsets = [0, 64], sizes = [8, 32], strides = [1, 1]} : vector<8x96xf32> to vector<8x32xf32>
    %173 = vector.extract_strided_slice %163 {offsets = [0, 64], sizes = [8, 32], strides = [1, 1]} : vector<8x96xf32> to vector<8x32xf32>
    %174 = arith.mulf %170, %173 : vector<8x32xf32>
    %175 = arith.addf %172, %174 : vector<8x32xf32>
    %176 = math.tanh %175 : vector<8x32xf32>
    %cst_61 = arith.constant 1.000000e+00 : f32
    %177 = vector.broadcast %cst_61 : f32 to vector<8x32xf32>
    %178 = arith.subf %177, %171 : vector<8x32xf32>
    %179 = arith.mulf %178, %176 : vector<8x32xf32>
    %180 = arith.mulf %171, %145 : vector<8x32xf32>
    %181 = arith.addf %179, %180 : vector<8x32xf32>
    %cst_62 = arith.constant dense<0.000000e+00> : vector<8x64xf32>
    %182 = tpu.matmul %181, %2, %cst_62 {dimension_numbers = #tpu.dot_dimension_numbers<[1], [0], [0], [1], [0, 0, 1, 1], [], []>} : vector<8x32xf32>, vector<32x64xf32>, vector<8x64xf32> -> vector<8x64xf32>
    %183 = arith.addf %159, %182 : vector<8x64xf32>
    %184 = arith.addf %183, %11 : vector<8x64xf32>
    %185 = arith.index_cast %c4_i32 : i32 to index
    %c0_63 = arith.constant 0 : index
    %c0_64 = arith.constant 0 : index
    %186 = vector.load %arg8[%185, %c0_63, %c0_64] : memref<8x8x64xf32, #tpu.memory_space<vmem>>, vector<1x8x64xf32>
    %187 = vector.shape_cast %186 : vector<1x8x64xf32> to vector<8x64xf32>
    %188 = vector.shape_cast %184 : vector<8x64xf32> to vector<1x8x64xf32>
    tpu.vector_store %arg8[%185, %c0_63, %c0_64], %188 {strides = array<i32>} : memref<8x8x64xf32, #tpu.memory_space<vmem>>, vector<1x8x64xf32>,
    %189 = arith.index_cast %c4_i32 : i32 to index
    %c0_65 = arith.constant 0 : index
    %c0_66 = arith.constant 0 : index
    %190 = vector.load %arg9[%189, %c0_65, %c0_66] : memref<8x8x32xf32, #tpu.memory_space<vmem>>, vector<1x8x32xf32>
    %191 = vector.shape_cast %190 : vector<1x8x32xf32> to vector<8x32xf32>
    %192 = vector.shape_cast %181 : vector<8x32xf32> to vector<1x8x32xf32>
    tpu.vector_store %arg9[%189, %c0_65, %c0_66], %192 {strides = array<i32>} : memref<8x8x32xf32, #tpu.memory_space<vmem>>, vector<1x8x32xf32>,
    %c5_i32 = arith.constant 5 : i32
    %193 = arith.index_cast %c5_i32 : i32 to index
    %c0_67 = arith.constant 0 : index
    %c0_68 = arith.constant 0 : index
    %194 = vector.load %arg1[%193, %c0_67, %c0_68] : memref<8x8x64xf32, #tpu.memory_space<vmem>>, vector<1x8x64xf32>
    %195 = vector.shape_cast %194 : vector<1x8x64xf32> to vector<8x64xf32>
    %cst_69 = arith.constant dense<0.000000e+00> : vector<8x96xf32>
    %196 = tpu.matmul %195, %0, %cst_69 {dimension_numbers = #tpu.dot_dimension_numbers<[1], [0], [0], [1], [0, 0, 1, 1], [], []>} : vector<8x64xf32>, vector<64x96xf32>, vector<8x96xf32> -> vector<8x96xf32>
    %197 = arith.addf %196, %5 : vector<8x96xf32>
    %cst_70 = arith.constant dense<0.000000e+00> : vector<8x96xf32>
    %198 = tpu.matmul %181, %1, %cst_70 {dimension_numbers = #tpu.dot_dimension_numbers<[1], [0], [0], [1], [0, 0, 1, 1], [], []>} : vector<8x32xf32>, vector<32x96xf32>, vector<8x96xf32> -> vector<8x96xf32>
    %199 = arith.addf %198, %8 : vector<8x96xf32>
    %200 = arith.addf %197, %199 : vector<8x96xf32>
    %201 = arith.negf %200 : vector<8x96xf32>
    %202 = math.exp %201 : vector<8x96xf32>
    %cst_71 = arith.constant 1.000000e+00 : f32
    %203 = vector.broadcast %cst_71 : f32 to vector<8x96xf32>
    %204 = arith.addf %203, %202 : vector<8x96xf32>
    %205 = arith.divf %203, %204 : vector<8x96xf32>
    %206 = vector.extract_strided_slice %205 {offsets = [0, 0], sizes = [8, 32], strides = [1, 1]} : vector<8x96xf32> to vector<8x32xf32>
    %207 = vector.extract_strided_slice %205 {offsets = [0, 32], sizes = [8, 32], strides = [1, 1]} : vector<8x96xf32> to vector<8x32xf32>
    %208 = vector.extract_strided_slice %197 {offsets = [0, 64], sizes = [8, 32], strides = [1, 1]} : vector<8x96xf32> to vector<8x32xf32>
    %209 = vector.extract_strided_slice %199 {offsets = [0, 64], sizes = [8, 32], strides = [1, 1]} : vector<8x96xf32> to vector<8x32xf32>
    %210 = arith.mulf %206, %209 : vector<8x32xf32>
    %211 = arith.addf %208, %210 : vector<8x32xf32>
    %212 = math.tanh %211 : vector<8x32xf32>
    %cst_72 = arith.constant 1.000000e+00 : f32
    %213 = vector.broadcast %cst_72 : f32 to vector<8x32xf32>
    %214 = arith.subf %213, %207 : vector<8x32xf32>
    %215 = arith.mulf %214, %212 : vector<8x32xf32>
    %216 = arith.mulf %207, %181 : vector<8x32xf32>
    %217 = arith.addf %215, %216 : vector<8x32xf32>
    %cst_73 = arith.constant dense<0.000000e+00> : vector<8x64xf32>
    %218 = tpu.matmul %217, %2, %cst_73 {dimension_numbers = #tpu.dot_dimension_numbers<[1], [0], [0], [1], [0, 0, 1, 1], [], []>} : vector<8x32xf32>, vector<32x64xf32>, vector<8x64xf32> -> vector<8x64xf32>
    %219 = arith.addf %195, %218 : vector<8x64xf32>
    %220 = arith.addf %219, %11 : vector<8x64xf32>
    %221 = arith.index_cast %c5_i32 : i32 to index
    %c0_74 = arith.constant 0 : index
    %c0_75 = arith.constant 0 : index
    %222 = vector.load %arg8[%221, %c0_74, %c0_75] : memref<8x8x64xf32, #tpu.memory_space<vmem>>, vector<1x8x64xf32>
    %223 = vector.shape_cast %222 : vector<1x8x64xf32> to vector<8x64xf32>
    %224 = vector.shape_cast %220 : vector<8x64xf32> to vector<1x8x64xf32>
    tpu.vector_store %arg8[%221, %c0_74, %c0_75], %224 {strides = array<i32>} : memref<8x8x64xf32, #tpu.memory_space<vmem>>, vector<1x8x64xf32>,
    %225 = arith.index_cast %c5_i32 : i32 to index
    %c0_76 = arith.constant 0 : index
    %c0_77 = arith.constant 0 : index
    %226 = vector.load %arg9[%225, %c0_76, %c0_77] : memref<8x8x32xf32, #tpu.memory_space<vmem>>, vector<1x8x32xf32>
    %227 = vector.shape_cast %226 : vector<1x8x32xf32> to vector<8x32xf32>
    %228 = vector.shape_cast %217 : vector<8x32xf32> to vector<1x8x32xf32>
    tpu.vector_store %arg9[%225, %c0_76, %c0_77], %228 {strides = array<i32>} : memref<8x8x32xf32, #tpu.memory_space<vmem>>, vector<1x8x32xf32>,
    %c6_i32 = arith.constant 6 : i32
    %229 = arith.index_cast %c6_i32 : i32 to index
    %c0_78 = arith.constant 0 : index
    %c0_79 = arith.constant 0 : index
    %230 = vector.load %arg1[%229, %c0_78, %c0_79] : memref<8x8x64xf32, #tpu.memory_space<vmem>>, vector<1x8x64xf32>
    %231 = vector.shape_cast %230 : vector<1x8x64xf32> to vector<8x64xf32>
    %cst_80 = arith.constant dense<0.000000e+00> : vector<8x96xf32>
    %232 = tpu.matmul %231, %0, %cst_80 {dimension_numbers = #tpu.dot_dimension_numbers<[1], [0], [0], [1], [0, 0, 1, 1], [], []>} : vector<8x64xf32>, vector<64x96xf32>, vector<8x96xf32> -> vector<8x96xf32>
    %233 = arith.addf %232, %5 : vector<8x96xf32>
    %cst_81 = arith.constant dense<0.000000e+00> : vector<8x96xf32>
    %234 = tpu.matmul %217, %1, %cst_81 {dimension_numbers = #tpu.dot_dimension_numbers<[1], [0], [0], [1], [0, 0, 1, 1], [], []>} : vector<8x32xf32>, vector<32x96xf32>, vector<8x96xf32> -> vector<8x96xf32>
    %235 = arith.addf %234, %8 : vector<8x96xf32>
    %236 = arith.addf %233, %235 : vector<8x96xf32>
    %237 = arith.negf %236 : vector<8x96xf32>
    %238 = math.exp %237 : vector<8x96xf32>
    %cst_82 = arith.constant 1.000000e+00 : f32
    %239 = vector.broadcast %cst_82 : f32 to vector<8x96xf32>
    %240 = arith.addf %239, %238 : vector<8x96xf32>
    %241 = arith.divf %239, %240 : vector<8x96xf32>
    %242 = vector.extract_strided_slice %241 {offsets = [0, 0], sizes = [8, 32], strides = [1, 1]} : vector<8x96xf32> to vector<8x32xf32>
    %243 = vector.extract_strided_slice %241 {offsets = [0, 32], sizes = [8, 32], strides = [1, 1]} : vector<8x96xf32> to vector<8x32xf32>
    %244 = vector.extract_strided_slice %233 {offsets = [0, 64], sizes = [8, 32], strides = [1, 1]} : vector<8x96xf32> to vector<8x32xf32>
    %245 = vector.extract_strided_slice %235 {offsets = [0, 64], sizes = [8, 32], strides = [1, 1]} : vector<8x96xf32> to vector<8x32xf32>
    %246 = arith.mulf %242, %245 : vector<8x32xf32>
    %247 = arith.addf %244, %246 : vector<8x32xf32>
    %248 = math.tanh %247 : vector<8x32xf32>
    %cst_83 = arith.constant 1.000000e+00 : f32
    %249 = vector.broadcast %cst_83 : f32 to vector<8x32xf32>
    %250 = arith.subf %249, %243 : vector<8x32xf32>
    %251 = arith.mulf %250, %248 : vector<8x32xf32>
    %252 = arith.mulf %243, %217 : vector<8x32xf32>
    %253 = arith.addf %251, %252 : vector<8x32xf32>
    %cst_84 = arith.constant dense<0.000000e+00> : vector<8x64xf32>
    %254 = tpu.matmul %253, %2, %cst_84 {dimension_numbers = #tpu.dot_dimension_numbers<[1], [0], [0], [1], [0, 0, 1, 1], [], []>} : vector<8x32xf32>, vector<32x64xf32>, vector<8x64xf32> -> vector<8x64xf32>
    %255 = arith.addf %231, %254 : vector<8x64xf32>
    %256 = arith.addf %255, %11 : vector<8x64xf32>
    %257 = arith.index_cast %c6_i32 : i32 to index
    %c0_85 = arith.constant 0 : index
    %c0_86 = arith.constant 0 : index
    %258 = vector.load %arg8[%257, %c0_85, %c0_86] : memref<8x8x64xf32, #tpu.memory_space<vmem>>, vector<1x8x64xf32>
    %259 = vector.shape_cast %258 : vector<1x8x64xf32> to vector<8x64xf32>
    %260 = vector.shape_cast %256 : vector<8x64xf32> to vector<1x8x64xf32>
    tpu.vector_store %arg8[%257, %c0_85, %c0_86], %260 {strides = array<i32>} : memref<8x8x64xf32, #tpu.memory_space<vmem>>, vector<1x8x64xf32>,
    %261 = arith.index_cast %c6_i32 : i32 to index
    %c0_87 = arith.constant 0 : index
    %c0_88 = arith.constant 0 : index
    %262 = vector.load %arg9[%261, %c0_87, %c0_88] : memref<8x8x32xf32, #tpu.memory_space<vmem>>, vector<1x8x32xf32>
    %263 = vector.shape_cast %262 : vector<1x8x32xf32> to vector<8x32xf32>
    %264 = vector.shape_cast %253 : vector<8x32xf32> to vector<1x8x32xf32>
    tpu.vector_store %arg9[%261, %c0_87, %c0_88], %264 {strides = array<i32>} : memref<8x8x32xf32, #tpu.memory_space<vmem>>, vector<1x8x32xf32>,
    %c7_i32 = arith.constant 7 : i32
    %265 = arith.index_cast %c7_i32 : i32 to index
    %c0_89 = arith.constant 0 : index
    %c0_90 = arith.constant 0 : index
    %266 = vector.load %arg1[%265, %c0_89, %c0_90] : memref<8x8x64xf32, #tpu.memory_space<vmem>>, vector<1x8x64xf32>
    %267 = vector.shape_cast %266 : vector<1x8x64xf32> to vector<8x64xf32>
    %cst_91 = arith.constant dense<0.000000e+00> : vector<8x96xf32>
    %268 = tpu.matmul %267, %0, %cst_91 {dimension_numbers = #tpu.dot_dimension_numbers<[1], [0], [0], [1], [0, 0, 1, 1], [], []>} : vector<8x64xf32>, vector<64x96xf32>, vector<8x96xf32> -> vector<8x96xf32>
    %269 = arith.addf %268, %5 : vector<8x96xf32>
    %cst_92 = arith.constant dense<0.000000e+00> : vector<8x96xf32>
    %270 = tpu.matmul %253, %1, %cst_92 {dimension_numbers = #tpu.dot_dimension_numbers<[1], [0], [0], [1], [0, 0, 1, 1], [], []>} : vector<8x32xf32>, vector<32x96xf32>, vector<8x96xf32> -> vector<8x96xf32>
    %271 = arith.addf %270, %8 : vector<8x96xf32>
    %272 = arith.addf %269, %271 : vector<8x96xf32>
    %273 = arith.negf %272 : vector<8x96xf32>
    %274 = math.exp %273 : vector<8x96xf32>
    %cst_93 = arith.constant 1.000000e+00 : f32
    %275 = vector.broadcast %cst_93 : f32 to vector<8x96xf32>
    %276 = arith.addf %275, %274 : vector<8x96xf32>
    %277 = arith.divf %275, %276 : vector<8x96xf32>
    %278 = vector.extract_strided_slice %277 {offsets = [0, 0], sizes = [8, 32], strides = [1, 1]} : vector<8x96xf32> to vector<8x32xf32>
    %279 = vector.extract_strided_slice %277 {offsets = [0, 32], sizes = [8, 32], strides = [1, 1]} : vector<8x96xf32> to vector<8x32xf32>
    %280 = vector.extract_strided_slice %269 {offsets = [0, 64], sizes = [8, 32], strides = [1, 1]} : vector<8x96xf32> to vector<8x32xf32>
    %281 = vector.extract_strided_slice %271 {offsets = [0, 64], sizes = [8, 32], strides = [1, 1]} : vector<8x96xf32> to vector<8x32xf32>
    %282 = arith.mulf %278, %281 : vector<8x32xf32>
    %283 = arith.addf %280, %282 : vector<8x32xf32>
    %284 = math.tanh %283 : vector<8x32xf32>
    %cst_94 = arith.constant 1.000000e+00 : f32
    %285 = vector.broadcast %cst_94 : f32 to vector<8x32xf32>
    %286 = arith.subf %285, %279 : vector<8x32xf32>
    %287 = arith.mulf %286, %284 : vector<8x32xf32>
    %288 = arith.mulf %279, %253 : vector<8x32xf32>
    %289 = arith.addf %287, %288 : vector<8x32xf32>
    %cst_95 = arith.constant dense<0.000000e+00> : vector<8x64xf32>
    %290 = tpu.matmul %289, %2, %cst_95 {dimension_numbers = #tpu.dot_dimension_numbers<[1], [0], [0], [1], [0, 0, 1, 1], [], []>} : vector<8x32xf32>, vector<32x64xf32>, vector<8x64xf32> -> vector<8x64xf32>
    %291 = arith.addf %267, %290 : vector<8x64xf32>
    %292 = arith.addf %291, %11 : vector<8x64xf32>
    %293 = arith.index_cast %c7_i32 : i32 to index
    %c0_96 = arith.constant 0 : index
    %c0_97 = arith.constant 0 : index
    %294 = vector.load %arg8[%293, %c0_96, %c0_97] : memref<8x8x64xf32, #tpu.memory_space<vmem>>, vector<1x8x64xf32>
    %295 = vector.shape_cast %294 : vector<1x8x64xf32> to vector<8x64xf32>
    %296 = vector.shape_cast %292 : vector<8x64xf32> to vector<1x8x64xf32>
    tpu.vector_store %arg8[%293, %c0_96, %c0_97], %296 {strides = array<i32>} : memref<8x8x64xf32, #tpu.memory_space<vmem>>, vector<1x8x64xf32>,
    %297 = arith.index_cast %c7_i32 : i32 to index
    %c0_98 = arith.constant 0 : index
    %c0_99 = arith.constant 0 : index
    %298 = vector.load %arg9[%297, %c0_98, %c0_99] : memref<8x8x32xf32, #tpu.memory_space<vmem>>, vector<1x8x32xf32>
    %299 = vector.shape_cast %298 : vector<1x8x32xf32> to vector<8x32xf32>
    %300 = vector.shape_cast %289 : vector<8x32xf32> to vector<1x8x32xf32>
    tpu.vector_store %arg9[%297, %c0_98, %c0_99], %300 {strides = array<i32>} : memref<8x8x32xf32, #tpu.memory_space<vmem>>, vector<1x8x32xf32>,
    %c8_i32 = arith.constant 8 : i32
    return
  }
}

</mosaic_0001>

<llo_original>
// kernel: decoder_cell_sequence.1
$region0: #{decoder_cell_sequence.1}
  #allocation0 [shape = 'u32[]', space=smem, size = 0x4, offset = 0x4, fixed_abs, tag = 'smem constant byte address 0x4 - core index']
  #allocation1 [shape = 'u32[144,128]{1,0:T(1,128)}', space=vmem, size = 0x12000, scoped, tag = 'internal scratch']
  %s0 = inlined_call_operand.hbm [shape: f32[8,32], index: 0, kind: input, shape index: {}]
  %s1 = inlined_call_operand.hbm [shape: f32[8,8,64], index: 1, kind: input, shape index: {}]
  %s2 = inlined_call_operand.hbm [shape: f32[64,96], index: 2, kind: input, shape index: {}]
  %s3 = inlined_call_operand.hbm [shape: f32[32,96], index: 3, kind: input, shape index: {}]
  %s4 = inlined_call_operand.vmem [shape: f32[1,96], index: 4, kind: input, shape index: {}]
  %s5 = inlined_call_operand.vmem [shape: f32[1,96], index: 5, kind: input, shape index: {}]
  %s6 = inlined_call_operand.hbm [shape: f32[32,64], index: 6, kind: input, shape index: {}]
  %s7 = inlined_call_operand.vmem [shape: f32[1,64], index: 7, kind: input, shape index: {}]
  %s8 = inlined_call_operand.hbm [shape: f32[8,8,64], index: 8, kind: output, shape index: {0}]
  %s9 = inlined_call_operand.hbm [shape: f32[8,8,32], index: 9, kind: output, shape index: {1}]
  %10 = xla_tuple %s8, %s9
  %s11 = sld [smem:[#allocation0]]
  $region70: #{decoder_cell_sequence.1} parent=0
    _
  %s13 = ssub.s32 1, %s11
  %s14 = scalar_select 0, %s13, %s11
  $region1: #{decoder_cell_sequence.1} parent=0
    #allocation2 [shape = 'u8[4096]{0}', space=vmem, size = 0x1000, scoped, tag = 'input window, operand 0, single buffered']
    #allocation3 [shape = 's32[1]{0}', space=sflag, size = 0x4, scoped, tag = 'scoped memory for decoder_cell_sequence.1']
    #allocation4 [shape = 's32[1]{0}', space=sflag, size = 0x4, scoped, tag = 'scoped memory for decoder_cell_sequence.1']
    #allocation5 [shape = 'u8[32768]{0}', space=vmem, size = 0x8000, scoped, tag = 'input window, operand 1, single buffered']
    #allocation6 [shape = 's32[1]{0}', space=sflag, size = 0x4, scoped, tag = 'scoped memory for decoder_cell_sequence.1']
    #allocation7 [shape = 'u8[32768]{0}', space=vmem, size = 0x8000, scoped, tag = 'input window, operand 2, single buffered']
    #allocation8 [shape = 'u8[16384]{0}', space=vmem, size = 0x4000, scoped, tag = 'input window, operand 3, single buffered']
    #allocation9 [shape = 's32[1]{0}', space=sflag, size = 0x4, scoped, tag = 'scoped memory for decoder_cell_sequence.1']
    #allocation10 [shape = 'u8[16384]{0}', space=vmem, size = 0x4000, scoped, tag = 'input window, operand 6, single buffered']
    #allocation11 [shape = 'u8[32768]{0}', space=vmem, size = 0x8000, scoped, tag = 'output window, operand 0, single buffered']
    #allocation12 [shape = 'u8[32768]{0}', space=vmem, size = 0x8000, scoped, tag = 'output window, operand 1, single buffered']
    #allocation13 [shape = 's32[1]{0}', space=sflag, size = 0x4, scoped, tag = 'scoped memory for decoder_cell_sequence.1']
    %15 = vsyncpa [#allocation3], 0
    %16 = vsyncpa [#allocation6], 0
    %17 = vsyncpa [#allocation9], 0
    %18 = vsyncpa [#allocation4], 0
    %19 = vsyncpa [#allocation13], 0
    // Predicated region
    $region2: #{decoder_cell_sequence.1} parent=1 // pred_check
      _
    $region3: #{decoder_cell_sequence.1} parent=1 // pred_check_branch
      %21 = sbr.rel (0) target = $region5
    $region4: #{decoder_cell_sequence.1} parent=1 // pred_region
      %s23 = ssub.s32 128, 128
      %24 = vsyncadd [#allocation3], %s23
      %s26 = sshll.u32 [#allocation2], 4
      %s27 = int_to_ptr.vmem [resolvable:$true] %s26
      %29 = dma.hbm_to_vmem [thread:$0]  %s0, 128, %s27, [#allocation3]
    $region5: #{decoder_cell_sequence.1} parent=1 // pred_fallthru
      _
    // Predicated region
    $region6: #{decoder_cell_sequence.1} parent=1 // pred_check
      _
    $region7: #{decoder_cell_sequence.1} parent=1 // pred_check_branch
      %31 = sbr.rel (0) target = $region9
    $region8: #{decoder_cell_sequence.1} parent=1 // pred_region
      %s33 = ssub.s32 1024, 1024
      %34 = vsyncadd [#allocation6], %s33
      %s35 = sshll.u32 [#allocation5], 4
      %s36 = int_to_ptr.vmem [resolvable:$true] %s35
      %41 = dma.hbm_to_vmem [thread:$0]  %s1, 1024, %s36, [#allocation6], 128, 128, 8
    $region9: #{decoder_cell_sequence.1} parent=1 // pred_fallthru
      _
    // Predicated region
    $region10: #{decoder_cell_sequence.1} parent=1 // pred_check
      _
    $region11: #{decoder_cell_sequence.1} parent=1 // pred_check_branch
      %43 = sbr.rel (0) target = $region13
    $region12: #{decoder_cell_sequence.1} parent=1 // pred_region
      %s45 = ssub.s32 1024, 1024
      %46 = vsyncadd [#allocation6], %s45
      %s47 = sshll.u32 [#allocation7], 4
      %s48 = int_to_ptr.vmem [resolvable:$true] %s47
      %53 = dma.hbm_to_vmem [thread:$0]  %s2, 1024, %s48, [#allocation6], 128, 128, 8
    $region13: #{decoder_cell_sequence.1} parent=1 // pred_fallthru
      _
    // Predicated region
    $region14: #{decoder_cell_sequence.1} parent=1 // pred_check
      _
    $region15: #{decoder_cell_sequence.1} parent=1 // pred_check_branch
      %55 = sbr.rel (0) target = $region17
    $region16: #{decoder_cell_sequence.1} parent=1 // pred_region
      %s57 = ssub.s32 512, 512
      %58 = vsyncadd [#allocation9], %s57
      %s59 = sshll.u32 [#allocation8], 4
      %s60 = int_to_ptr.vmem [resolvable:$true] %s59
      %65 = dma.hbm_to_vmem [thread:$0]  %s3, 512, %s60, [#allocation9], 128, 128, 8
    $region17: #{decoder_cell_sequence.1} parent=1 // pred_fallthru
      _
    // Predicated region
    $region18: #{decoder_cell_sequence.1} parent=1 // pred_check
      _
    $region19: #{decoder_cell_sequence.1} parent=1 // pred_check_branch
      %67 = sbr.rel (0) target = $region21
    $region20: #{decoder_cell_sequence.1} parent=1 // pred_region
      _
    $region21: #{decoder_cell_sequence.1} parent=1 // pred_fallthru
      _
    // Predicated region
    $region22: #{decoder_cell_sequence.1} parent=1 // pred_check
      _
    $region23: #{decoder_cell_sequence.1} parent=1 // pred_check_branch
      %69 = sbr.rel (0) target = $region25
    $region24: #{decoder_cell_sequence.1} parent=1 // pred_region
      _
    $region25: #{decoder_cell_sequence.1} parent=1 // pred_fallthru
      _
    // Predicated region
    $region26: #{decoder_cell_sequence.1} parent=1 // pred_check
      _
    $region27: #{decoder_cell_sequence.1} parent=1 // pred_check_branch
      %71 = sbr.rel (0) target = $region29
    $region28: #{decoder_cell_sequence.1} parent=1 // pred_region
      %s73 = ssub.s32 512, 512
      %74 = vsyncadd [#allocation9], %s73
      %s75 = sshll.u32 [#allocation10], 4
      %s76 = int_to_ptr.vmem [resolvable:$true] %s75
      %81 = dma.hbm_to_vmem [thread:$0]  %s6, 512, %s76, [#allocation9], 128, 128, 8
    $region29: #{decoder_cell_sequence.1} parent=1 // pred_fallthru
      _
    // Predicated region
    $region30: #{decoder_cell_sequence.1} parent=1 // pred_check
      _
    $region31: #{decoder_cell_sequence.1} parent=1 // pred_check_branch
      %83 = sbr.rel (0) target = $region33
    $region32: #{decoder_cell_sequence.1} parent=1 // pred_region
      _
    $region33: #{decoder_cell_sequence.1} parent=1 // pred_fallthru
      _
    // Predicated region
    $region34: #{decoder_cell_sequence.1} parent=1 // pred_check
      _
    $region35: #{decoder_cell_sequence.1} parent=1 // pred_check_branch
      %85 = sbr.rel (0) target = $region37
    $region36: #{decoder_cell_sequence.1} parent=1 // pred_region
      %86 = dma.done [#allocation3], 128
    $region37: #{decoder_cell_sequence.1} parent=1 // pred_fallthru
      _
    // Predicated region
    $region38: #{decoder_cell_sequence.1} parent=1 // pred_check
      _
    $region39: #{decoder_cell_sequence.1} parent=1 // pred_check_branch
      %88 = sbr.rel (0) target = $region41
    $region40: #{decoder_cell_sequence.1} parent=1 // pred_region
      %89 = dma.done [#allocation6], 1024
    $region41: #{decoder_cell_sequence.1} parent=1 // pred_fallthru
      _
    // Predicated region
    $region42: #{decoder_cell_sequence.1} parent=1 // pred_check
      _
    $region43: #{decoder_cell_sequence.1} parent=1 // pred_check_branch
      %91 = sbr.rel (0) target = $region45
    $region44: #{decoder_cell_sequence.1} parent=1 // pred_region
      %92 = dma.done [#allocation6], 1024
    $region45: #{decoder_cell_sequence.1} parent=1 // pred_fallthru
      _
    // Predicated region
    $region46: #{decoder_cell_sequence.1} parent=1 // pred_check
      _
    $region47: #{decoder_cell_sequence.1} parent=1 // pred_check_branch
      %94 = sbr.rel (0) target = $region49
    $region48: #{decoder_cell_sequence.1} parent=1 // pred_region
      %95 = dma.done [#allocation9], 512
    $region49: #{decoder_cell_sequence.1} parent=1 // pred_fallthru
      _
    // Predicated region
    $region50: #{decoder_cell_sequence.1} parent=1 // pred_check
      _
    $region51: #{decoder_cell_sequence.1} parent=1 // pred_check_branch
      %97 = sbr.rel (0) target = $region53
    $region52: #{decoder_cell_sequence.1} parent=1 // pred_region
      %98 = dma.done [#allocation9], 512
    $region53: #{decoder_cell_sequence.1} parent=1 // pred_fallthru
      _
    %v99 = vld [vmem:[#allocation7] sm:$0xff]
    %v100 = vld [vmem:[#allocation7 + $0x8] sm:$0xff]
    %v101 = vld [vmem:[#allocation7 + $0x10] sm:$0xff]
    %v102 = vld [vmem:[#allocation7 + $0x18] sm:$0xff]
    %v103 = vld [vmem:[#allocation7 + $0x20] sm:$0xff]
    %v104 = vld [vmem:[#allocation7 + $0x28] sm:$0xff]
    %v105 = vld [vmem:[#allocation7 + $0x30] sm:$0xff]
    %v106 = vld [vmem:[#allocation7 + $0x38] sm:$0xff]
    %v107 = vld [vmem:[#allocation8] sm:$0xff]
    %v108 = vld [vmem:[#allocation8 + $0x8] sm:$0xff]
    %v109 = vld [vmem:[#allocation8 + $0x10] sm:$0xff]
    %v110 = vld [vmem:[#allocation8 + $0x18] sm:$0xff]
    %v111 = vld [vmem:[#allocation10] sm:$0xff]
    %v112 = vld [vmem:[#allocation10 + $0x8] sm:$0xff]
    %v113 = vld [vmem:[#allocation10 + $0x10] sm:$0xff]
    %v114 = vld [vmem:[#allocation10 + $0x18] sm:$0xff]
    %v115 = vld [vmem:[%s4] sm:$0x1]
    %v117 = vlaneseq
    %v118 = vshrl.u32 %v117, 7
    %v119 = vsub.s32 0, %v118
    %v120 = vrot.slane %v115, %v119
    %v122 = vld [vmem:[%s5] sm:$0x1]
    %v124 = vlaneseq
    %v125 = vshrl.u32 %v124, 7
    %v126 = vsub.s32 0, %v125
    %v127 = vrot.slane %v122, %v126
    %v129 = vld [vmem:[%s7] sm:$0x1]
    %v131 = vlaneseq
    %v132 = vshrl.u32 %v131, 7
    %v133 = vsub.s32 0, %v132
    %v134 = vrot.slane %v129, %v133
    %v136 = vld [vmem:[#allocation2] sm:$0xff]
    %v137 = vld [vmem:[#allocation5] sm:$0xff]
    %vm138 = vcmask 523264
    %v140 = vsel %vm138, %v137, 0
    %142 = vmatprep.subr.mxu0 0.0
    %143 = vmatpush1.msra.mxu0 %v99
    %144 = vmatprep.subr.mxu0 0.0
    %145 = vmatpush1.msra.mxu0 %v100
    %146 = vmatprep.subr.mxu0 0.0
    %147 = vmatpush1.msra.mxu0 %v101
    %148 = vmatprep.subr.mxu0 0.0
    %149 = vmatpush1.msra.mxu0 %v102
    %150 = vmatprep.subr.mxu0 0.0
    %151 = vmatpush1.msra.mxu0 %v103
    %152 = vmatprep.subr.mxu0 0.0
    %153 = vmatpush1.msra.mxu0 %v104
    %154 = vmatprep.subr.mxu0 0.0
    %155 = vmatpush1.msra.mxu0 %v105
    %156 = vmatprep.subr.mxu0 0.0
    %157 = vmatpush1.msra.mxu0 %v106
    %158 = vmatprep.subr.mxu0 0.0
    %159 = vmatpush1.msra.mxu0 0.0
    %160 = vmatprep.subr.mxu0 0.0
    %161 = vmatpush1.msra.mxu0 0.0
    %162 = vmatprep.subr.mxu0 0.0
    %163 = vmatpush1.msra.mxu0 0.0
    %164 = vmatprep.subr.mxu0 0.0
    %165 = vmatpush1.msra.mxu0 0.0
    %166 = vmatprep.subr.mxu0 0.0
    %167 = vmatpush1.msra.mxu0 0.0
    %168 = vmatprep.subr.mxu0 0.0
    %169 = vmatpush1.msra.mxu0 0.0
    %170 = vmatprep.subr.mxu0 0.0
    %171 = vmatpush1.msra.mxu0 0.0
    %172 = vmatprep.subr.mxu0 0.0
    %173 = vmatpush1.msra.mxu0 0.0
    %174 = vmatprep.subr.mxu0 0.0
    %175 = vmatpush1.msra.mxu0 0.0
    %176 = vmatprep.subr.mxu0 0.0
    %177 = vmatpush1.msra.mxu0 0.0
    %178 = vmatprep.subr.mxu0 0.0
    %179 = vmatpush1.msra.mxu0 0.0
    %180 = vmatprep.subr.mxu0 0.0
    %181 = vmatpush1.msra.mxu0 0.0
    %182 = vmatprep.subr.mxu0 0.0
    %183 = vmatpush1.msra.mxu0 0.0
    %184 = vmatprep.subr.mxu0 0.0
    %185 = vmatpush1.msra.mxu0 0.0
    %186 = vmatprep.subr.mxu0 0.0
    %187 = vmatpush1.msra.mxu0 0.0
    %188 = vmatprep.subr.mxu0 0.0
    %189 = vmatpush1.msra.mxu0 0.0
    %190 = vmatprep.subr.mxu0 0.0
    %191 = vmatpush1.msra.mxu0 0.0
    %192 = vmatprep.subr.mxu0 0.0
    %193 = vmatpush1.msra.mxu0 0.0
    %194 = vmatprep.subr.mxu0 0.0
    %195 = vmatpush1.msra.mxu0 0.0
    %196 = vmatprep.subr.mxu0 0.0
    %197 = vmatpush1.msra.mxu0 0.0
    %198 = vmatprep.subr.mxu0 0.0
    %199 = vmatpush1.msra.mxu0 0.0
    %200 = vmatprep.subr.mxu0 0.0
    %201 = vmatpush1.msra.mxu0 0.0
    %202 = vmatprep.subr.mxu0 0.0
    %203 = vmatpush1.msra.mxu0 0.0
    %204 = vmatprep.subr.mxu0 0.0
    %205 = vmatpush1.msra.mxu0 0.0
    %206 = vmatprep.mubr.f32.mxu0 0.0
    %207 = vmatmul.mubr.f32.gmra.mrb[0].mxu0 %v140
    %v208 = vpop.f32.mrb[0].mxu0
    %v209 = vadd.f32 %v120, %v208
    %v210 = vpop.f32.mrb[0].mxu0
    %211 = vdwg.mxu0
    %vm212 = vcmask 261120
    %v214 = vsel %vm212, %v136, 0
    %216 = vmatprep.subr.mxu0 0.0
    %217 = vmatpush1.msra.mxu0 %v107
    %218 = vmatprep.subr.mxu0 0.0
    %219 = vmatpush1.msra.mxu0 %v108
    %220 = vmatprep.subr.mxu0 0.0
    %221 = vmatpush1.msra.mxu0 %v109
    %222 = vmatprep.subr.mxu0 0.0
    %223 = vmatpush1.msra.mxu0 %v110
    %224 = vmatprep.subr.mxu0 0.0
    %225 = vmatpush1.msra.mxu0 0.0
    %226 = vmatprep.subr.mxu0 0.0
    %227 = vmatpush1.msra.mxu0 0.0
    %228 = vmatprep.subr.mxu0 0.0
    %229 = vmatpush1.msra.mxu0 0.0
    %230 = vmatprep.subr.mxu0 0.0
    %231 = vmatpush1.msra.mxu0 0.0
    %232 = vmatprep.subr.mxu0 0.0
    %233 = vmatpush1.msra.mxu0 0.0
    %234 = vmatprep.subr.mxu0 0.0
    %235 = vmatpush1.msra.mxu0 0.0
    %236 = vmatprep.subr.mxu0 0.0
    %237 = vmatpush1.msra.mxu0 0.0
    %238 = vmatprep.subr.mxu0 0.0
    %239 = vmatpush1.msra.mxu0 0.0
    %240 = vmatprep.subr.mxu0 0.0
    %241 = vmatpush1.msra.mxu0 0.0
    %242 = vmatprep.subr.mxu0 0.0
    %243 = vmatpush1.msra.mxu0 0.0
    %244 = vmatprep.subr.mxu0 0.0
    %245 = vmatpush1.msra.mxu0 0.0
    %246 = vmatprep.subr.mxu0 0.0
    %247 = vmatpush1.msra.mxu0 0.0
    %248 = vmatprep.subr.mxu0 0.0
    %249 = vmatpush1.msra.mxu0 0.0
    %250 = vmatprep.subr.mxu0 0.0
    %251 = vmatpush1.msra.mxu0 0.0
    %252 = vmatprep.subr.mxu0 0.0
    %253 = vmatpush1.msra.mxu0 0.0
    %254 = vmatprep.subr.mxu0 0.0
    %255 = vmatpush1.msra.mxu0 0.0
    %256 = vmatprep.subr.mxu0 0.0
    %257 = vmatpush1.msra.mxu0 0.0
    %258 = vmatprep.subr.mxu0 0.0
    %259 = vmatpush1.msra.mxu0 0.0
    %260 = vmatprep.subr.mxu0 0.0
    %261 = vmatpush1.msra.mxu0 0.0
    %262 = vmatprep.subr.mxu0 0.0
    %263 = vmatpush1.msra.mxu0 0.0
    %264 = vmatprep.subr.mxu0 0.0
    %265 = vmatpush1.msra.mxu0 0.0
    %266 = vmatprep.subr.mxu0 0.0
    %267 = vmatpush1.msra.mxu0 0.0
    %268 = vmatprep.subr.mxu0 0.0
    %269 = vmatpush1.msra.mxu0 0.0
    %270 = vmatprep.subr.mxu0 0.0
    %271 = vmatpush1.msra.mxu0 0.0
    %272 = vmatprep.subr.mxu0 0.0
    %273 = vmatpush1.msra.mxu0 0.0
    %274 = vmatprep.subr.mxu0 0.0
    %275 = vmatpush1.msra.mxu0 0.0
    %276 = vmatprep.subr.mxu0 0.0
    %277 = vmatpush1.msra.mxu0 0.0
    %278 = vmatprep.subr.mxu0 0.0
    %279 = vmatpush1.msra.mxu0 0.0
    %280 = vmatprep.mubr.f32.mxu0 0.0
    %281 = vmatmul.mubr.f32.gmra.mrb[0].mxu0 %v214
    %v282 = vpop.f32.mrb[0].mxu0
    %v283 = vadd.f32 %v127, %v282
    %v284 = vpop.f32.mrb[0].mxu0
    %285 = vdwg.mxu0
    %v286 = vadd.f32 %v209, %v283
    %v287 = vxor.u32 %v286, 2147483648
    %v288 = vmul.f32 %v287, 1.442695
    %v289 = vpow.pop %v288
    %v290 = vadd.f32 %v289, 1.0
    %v291 = vrcp.pop %v290
    %v292 = vmul.f32 1.0, %v291
    %294 = vrot.lane.b32.xlu0 %v283, 64
    %v295 = vpop.permute.xlu0 %294
    %v297 = vmul.f32 %v292, %v295
    %299 = vrot.lane.b32.xlu0 %v297, 64
    %v300 = vpop.permute.xlu0 %299
    %v302 = vadd.f32 %v209, %v300
    %v303 = vtanh.pop %v302
    %v304 = vsub.f32 1.0, %v292
    %306 = vrot.lane.b32.xlu0 %v303, 96
    %v307 = vpop.permute.xlu0 %306
    %v309 = vmul.f32 %v304, %v307
    %310 = vrot.lane.b32.xlu0 %v136, 32
    %v311 = vpop.permute.xlu0 %310
    %v313 = vmul.f32 %v292, %v311
    %v314 = vadd.f32 %v309, %v313
    %316 = vrot.lane.b32.xlu0 %v314, 96
    %v317 = vpop.permute.xlu0 %316
    %v318 = vsel %vm212, %v317, 0
    %320 = vmatprep.subr.mxu0 0.0
    %321 = vmatpush1.msra.mxu0 %v111
    %322 = vmatprep.subr.mxu0 0.0
    %323 = vmatpush1.msra.mxu0 %v112
    %324 = vmatprep.subr.mxu0 0.0
    %325 = vmatpush1.msra.mxu0 %v113
    %326 = vmatprep.subr.mxu0 0.0
    %327 = vmatpush1.msra.mxu0 %v114
    %328 = vmatprep.subr.mxu0 0.0
    %329 = vmatpush1.msra.mxu0 0.0
    %330 = vmatprep.subr.mxu0 0.0
    %331 = vmatpush1.msra.mxu0 0.0
    %332 = vmatprep.subr.mxu0 0.0
    %333 = vmatpush1.msra.mxu0 0.0
    %334 = vmatprep.subr.mxu0 0.0
    %335 = vmatpush1.msra.mxu0 0.0
    %336 = vmatprep.subr.mxu0 0.0
    %337 = vmatpush1.msra.mxu0 0.0
    %338 = vmatprep.subr.mxu0 0.0
    %339 = vmatpush1.msra.mxu0 0.0
    %340 = vmatprep.subr.mxu0 0.0
    %341 = vmatpush1.msra.mxu0 0.0
    %342 = vmatprep.subr.mxu0 0.0
    %343 = vmatpush1.msra.mxu0 0.0
    %344 = vmatprep.subr.mxu0 0.0
    %345 = vmatpush1.msra.mxu0 0.0
    %346 = vmatprep.subr.mxu0 0.0
    %347 = vmatpush1.msra.mxu0 0.0
    %348 = vmatprep.subr.mxu0 0.0
    %349 = vmatpush1.msra.mxu0 0.0
    %350 = vmatprep.subr.mxu0 0.0
    %351 = vmatpush1.msra.mxu0 0.0
    %352 = vmatprep.subr.mxu0 0.0
    %353 = vmatpush1.msra.mxu0 0.0
    %354 = vmatprep.subr.mxu0 0.0
    %355 = vmatpush1.msra.mxu0 0.0
    %356 = vmatprep.subr.mxu0 0.0
    %357 = vmatpush1.msra.mxu0 0.0
    %358 = vmatprep.subr.mxu0 0.0
    %359 = vmatpush1.msra.mxu0 0.0
    %360 = vmatprep.subr.mxu0 0.0
    %361 = vmatpush1.msra.mxu0 0.0
    %362 = vmatprep.subr.mxu0 0.0
    %363 = vmatpush1.msra.mxu0 0.0
    %364 = vmatprep.subr.mxu0 0.0
    %365 = vmatpush1.msra.mxu0 0.0
    %366 = vmatprep.subr.mxu0 0.0
    %367 = vmatpush1.msra.mxu0 0.0
    %368 = vmatprep.subr.mxu0 0.0
    %369 = vmatpush1.msra.mxu0 0.0
    %370 = vmatprep.subr.mxu0 0.0
    %371 = vmatpush1.msra.mxu0 0.0
    %372 = vmatprep.subr.mxu0 0.0
    %373 = vmatpush1.msra.mxu0 0.0
    %374 = vmatprep.subr.mxu0 0.0
    %375 = vmatpush1.msra.mxu0 0.0
    %376 = vmatprep.subr.mxu0 0.0
    %377 = vmatpush1.msra.mxu0 0.0
    %378 = vmatprep.subr.mxu0 0.0
    %379 = vmatpush1.msra.mxu0 0.0
    %380 = vmatprep.subr.mxu0 0.0
    %381 = vmatpush1.msra.mxu0 0.0
    %382 = vmatprep.subr.mxu0 0.0
    %383 = vmatpush1.msra.mxu0 0.0
    %384 = vmatprep.mubr.f32.mxu0 0.0
    %385 = vmatmul.mubr.f32.gmra.mrb[0].mxu0 %v318
    %v386 = vpop.f32.mrb[0].mxu0
    %v387 = vadd.f32 0.0, %v386
    %v388 = vpop.f32.mrb[0].mxu0
    %389 = vdwg.mxu0
    %v390 = vadd.f32 %v137, %v387
    %v391 = vadd.f32 %v390, %v134
    %392 = vst.msk [vmem:[#allocation11] sm:$0xff] %vm138, %v391
    %394 = vst.msk [vmem:[#allocation12] sm:$0xff] %vm212, %v317
    %s395 = scalar_lea.vmem [#allocation5], 8
    %v396 = vld [vmem:[%s395] sm:$0xff]
    %v398 = vsel %vm138, %v396, 0
    %400 = vmatprep.subr.mxu0 0.0
    %401 = vmatpush1.msra.mxu0 %v99
    %402 = vmatprep.subr.mxu0 0.0
    %403 = vmatpush1.msra.mxu0 %v100
    %404 = vmatprep.subr.mxu0 0.0
    %405 = vmatpush1.msra.mxu0 %v101
    %406 = vmatprep.subr.mxu0 0.0
    %407 = vmatpush1.msra.mxu0 %v102
    %408 = vmatprep.subr.mxu0 0.0
    %409 = vmatpush1.msra.mxu0 %v103
    %410 = vmatprep.subr.mxu0 0.0
    %411 = vmatpush1.msra.mxu0 %v104
    %412 = vmatprep.subr.mxu0 0.0
    %413 = vmatpush1.msra.mxu0 %v105
    %414 = vmatprep.subr.mxu0 0.0
    %415 = vmatpush1.msra.mxu0 %v106
    %416 = vmatprep.subr.mxu0 0.0
    %417 = vmatpush1.msra.mxu0 0.0
    %418 = vmatprep.subr.mxu0 0.0
    %419 = vmatpush1.msra.mxu0 0.0
    %420 = vmatprep.subr.mxu0 0.0
    %421 = vmatpush1.msra.mxu0 0.0
    %422 = vmatprep.subr.mxu0 0.0
    %423 = vmatpush1.msra.mxu0 0.0
    %424 = vmatprep.subr.mxu0 0.0
    %425 = vmatpush1.msra.mxu0 0.0
    %426 = vmatprep.subr.mxu0 0.0
    %427 = vmatpush1.msra.mxu0 0.0
    %428 = vmatprep.subr.mxu0 0.0
    %429 = vmatpush1.msra.mxu0 0.0
    %430 = vmatprep.subr.mxu0 0.0
    %431 = vmatpush1.msra.mxu0 0.0
    %432 = vmatprep.subr.mxu0 0.0
    %433 = vmatpush1.msra.mxu0 0.0
    %434 = vmatprep.subr.mxu0 0.0
    %435 = vmatpush1.msra.mxu0 0.0
    %436 = vmatprep.subr.mxu0 0.0
    %437 = vmatpush1.msra.mxu0 0.0
    %438 = vmatprep.subr.mxu0 0.0
    %439 = vmatpush1.msra.mxu0 0.0
    %440 = vmatprep.subr.mxu0 0.0
    %441 = vmatpush1.msra.mxu0 0.0
    %442 = vmatprep.subr.mxu0 0.0
    %443 = vmatpush1.msra.mxu0 0.0
    %444 = vmatprep.subr.mxu0 0.0
    %445 = vmatpush1.msra.mxu0 0.0
    %446 = vmatprep.subr.mxu0 0.0
    %447 = vmatpush1.msra.mxu0 0.0
    %448 = vmatprep.subr.mxu0 0.0
    %449 = vmatpush1.msra.mxu0 0.0
    %450 = vmatprep.subr.mxu0 0.0
    %451 = vmatpush1.msra.mxu0 0.0
    %452 = vmatprep.subr.mxu0 0.0
    %453 = vmatpush1.msra.mxu0 0.0
    %454 = vmatprep.subr.mxu0 0.0
    %455 = vmatpush1.msra.mxu0 0.0
    %456 = vmatprep.subr.mxu0 0.0
    %457 = vmatpush1.msra.mxu0 0.0
    %458 = vmatprep.subr.mxu0 0.0
    %459 = vmatpush1.msra.mxu0 0.0
    %460 = vmatprep.subr.mxu0 0.0
    %461 = vmatpush1.msra.mxu0 0.0
    %462 = vmatprep.subr.mxu0 0.0
    %463 = vmatpush1.msra.mxu0 0.0
    %464 = vmatprep.mubr.f32.mxu0 0.0
    %465 = vmatmul.mubr.f32.gmra.mrb[0].mxu0 %v398
    %v466 = vpop.f32.mrb[0].mxu0
    %v467 = vadd.f32 %v120, %v466
    %v468 = vpop.f32.mrb[0].mxu0
    %469 = vdwg.mxu0
    %470 = vmatprep.subr.mxu0 0.0
    %471 = vmatpush1.msra.mxu0 %v107
    %472 = vmatprep.subr.mxu0 0.0
    %473 = vmatpush1.msra.mxu0 %v108
    %474 = vmatprep.subr.mxu0 0.0
    %475 = vmatpush1.msra.mxu0 %v109
    %476 = vmatprep.subr.mxu0 0.0
    %477 = vmatpush1.msra.mxu0 %v110
    %478 = vmatprep.subr.mxu0 0.0
    %479 = vmatpush1.msra.mxu0 0.0
    %480 = vmatprep.subr.mxu0 0.0
    %481 = vmatpush1.msra.mxu0 0.0
    %482 = vmatprep.subr.mxu0 0.0
    %483 = vmatpush1.msra.mxu0 0.0
    %484 = vmatprep.subr.mxu0 0.0
    %485 = vmatpush1.msra.mxu0 0.0
    %486 = vmatprep.subr.mxu0 0.0
    %487 = vmatpush1.msra.mxu0 0.0
    %488 = vmatprep.subr.mxu0 0.0
    %489 = vmatpush1.msra.mxu0 0.0
    %490 = vmatprep.subr.mxu0 0.0
    %491 = vmatpush1.msra.mxu0 0.0
    %492 = vmatprep.subr.mxu0 0.0
    %493 = vmatpush1.msra.mxu0 0.0
    %494 = vmatprep.subr.mxu0 0.0
    %495 = vmatpush1.msra.mxu0 0.0
    %496 = vmatprep.subr.mxu0 0.0
    %497 = vmatpush1.msra.mxu0 0.0
    %498 = vmatprep.subr.mxu0 0.0
    %499 = vmatpush1.msra.mxu0 0.0
    %500 = vmatprep.subr.mxu0 0.0
    %501 = vmatpush1.msra.mxu0 0.0
    %502 = vmatprep.subr.mxu0 0.0
    %503 = vmatpush1.msra.mxu0 0.0
    %504 = vmatprep.subr.mxu0 0.0
    %505 = vmatpush1.msra.mxu0 0.0
    %506 = vmatprep.subr.mxu0 0.0
    %507 = vmatpush1.msra.mxu0 0.0
    %508 = vmatprep.subr.mxu0 0.0
    %509 = vmatpush1.msra.mxu0 0.0
    %510 = vmatprep.subr.mxu0 0.0
    %511 = vmatpush1.msra.mxu0 0.0
    %512 = vmatprep.subr.mxu0 0.0
    %513 = vmatpush1.msra.mxu0 0.0
    %514 = vmatprep.subr.mxu0 0.0
    %515 = vmatpush1.msra.mxu0 0.0
    %516 = vmatprep.subr.mxu0 0.0
    %517 = vmatpush1.msra.mxu0 0.0
    %518 = vmatprep.subr.mxu0 0.0
    %519 = vmatpush1.msra.mxu0 0.0
    %520 = vmatprep.subr.mxu0 0.0
    %521 = vmatpush1.msra.mxu0 0.0
    %522 = vmatprep.subr.mxu0 0.0
    %523 = vmatpush1.msra.mxu0 0.0
    %524 = vmatprep.subr.mxu0 0.0
    %525 = vmatpush1.msra.mxu0 0.0
    %526 = vmatprep.subr.mxu0 0.0
    %527 = vmatpush1.msra.mxu0 0.0
    %528 = vmatprep.subr.mxu0 0.0
    %529 = vmatpush1.msra.mxu0 0.0
    %530 = vmatprep.subr.mxu0 0.0
    %531 = vmatpush1.msra.mxu0 0.0
    %532 = vmatprep.subr.mxu0 0.0
    %533 = vmatpush1.msra.mxu0 0.0
    %534 = vmatprep.mubr.f32.mxu0 0.0
    %535 = vmatmul.mubr.f32.gmra.mrb[0].mxu0 %v318
    %v536 = vpop.f32.mrb[0].mxu0
    %v537 = vadd.f32 %v127, %v536
    %v538 = vpop.f32.mrb[0].mxu0
    %539 = vdwg.mxu0
    %v540 = vadd.f32 %v467, %v537
    %v541 = vxor.u32 %v540, 2147483648
    %v542 = vmul.f32 %v541, 1.442695
    %v543 = vpow.pop %v542
    %v544 = vadd.f32 %v543, 1.0
    %v545 = vrcp.pop %v544
    %v546 = vmul.f32 1.0, %v545
    %548 = vrot.lane.b32.xlu0 %v537, 64
    %v549 = vpop.permute.xlu0 %548
    %v551 = vmul.f32 %v546, %v549
    %553 = vrot.lane.b32.xlu0 %v551, 64
    %v554 = vpop.permute.xlu0 %553
    %v556 = vadd.f32 %v467, %v554
    %v557 = vtanh.pop %v556
    %v558 = vsub.f32 1.0, %v546
    %560 = vrot.lane.b32.xlu0 %v557, 96
    %v561 = vpop.permute.xlu0 %560
    %v563 = vmul.f32 %v558, %v561
    %v564 = vmul.f32 %v546, %v314
    %v565 = vadd.f32 %v563, %v564
    %567 = vrot.lane.b32.xlu0 %v565, 96
    %v568 = vpop.permute.xlu0 %567
    %v569 = vsel %vm212, %v568, 0
    %571 = vmatprep.subr.mxu0 0.0
    %572 = vmatpush1.msra.mxu0 %v111
    %573 = vmatprep.subr.mxu0 0.0
    %574 = vmatpush1.msra.mxu0 %v112
    %575 = vmatprep.subr.mxu0 0.0
    %576 = vmatpush1.msra.mxu0 %v113
    %577 = vmatprep.subr.mxu0 0.0
    %578 = vmatpush1.msra.mxu0 %v114
    %579 = vmatprep.subr.mxu0 0.0
    %580 = vmatpush1.msra.mxu0 0.0
    %581 = vmatprep.subr.mxu0 0.0
    %582 = vmatpush1.msra.mxu0 0.0
    %583 = vmatprep.subr.mxu0 0.0
    %584 = vmatpush1.msra.mxu0 0.0
    %585 = vmatprep.subr.mxu0 0.0
    %586 = vmatpush1.msra.mxu0 0.0
    %587 = vmatprep.subr.mxu0 0.0
    %588 = vmatpush1.msra.mxu0 0.0
    %589 = vmatprep.subr.mxu0 0.0
    %590 = vmatpush1.msra.mxu0 0.0
    %591 = vmatprep.subr.mxu0 0.0
    %592 = vmatpush1.msra.mxu0 0.0
    %593 = vmatprep.subr.mxu0 0.0
    %594 = vmatpush1.msra.mxu0 0.0
    %595 = vmatprep.subr.mxu0 0.0
    %596 = vmatpush1.msra.mxu0 0.0
    %597 = vmatprep.subr.mxu0 0.0
    %598 = vmatpush1.msra.mxu0 0.0
    %599 = vmatprep.subr.mxu0 0.0
    %600 = vmatpush1.msra.mxu0 0.0
    %601 = vmatprep.subr.mxu0 0.0
    %602 = vmatpush1.msra.mxu0 0.0
    %603 = vmatprep.subr.mxu0 0.0
    %604 = vmatpush1.msra.mxu0 0.0
    %605 = vmatprep.subr.mxu0 0.0
    %606 = vmatpush1.msra.mxu0 0.0
    %607 = vmatprep.subr.mxu0 0.0
    %608 = vmatpush1.msra.mxu0 0.0
    %609 = vmatprep.subr.mxu0 0.0
    %610 = vmatpush1.msra.mxu0 0.0
    %611 = vmatprep.subr.mxu0 0.0
    %612 = vmatpush1.msra.mxu0 0.0
    %613 = vmatprep.subr.mxu0 0.0
    %614 = vmatpush1.msra.mxu0 0.0
    %615 = vmatprep.subr.mxu0 0.0
    %616 = vmatpush1.msra.mxu0 0.0
    %617 = vmatprep.subr.mxu0 0.0
    %618 = vmatpush1.msra.mxu0 0.0
    %619 = vmatprep.subr.mxu0 0.0
    %620 = vmatpush1.msra.mxu0 0.0
    %621 = vmatprep.subr.mxu0 0.0
    %622 = vmatpush1.msra.mxu0 0.0
    %623 = vmatprep.subr.mxu0 0.0
    %624 = vmatpush1.msra.mxu0 0.0
    %625 = vmatprep.subr.mxu0 0.0
    %626 = vmatpush1.msra.mxu0 0.0
    %627 = vmatprep.subr.mxu0 0.0
    %628 = vmatpush1.msra.mxu0 0.0
    %629 = vmatprep.subr.mxu0 0.0
    %630 = vmatpush1.msra.mxu0 0.0
    %631 = vmatprep.subr.mxu0 0.0
    %632 = vmatpush1.msra.mxu0 0.0
    %633 = vmatprep.subr.mxu0 0.0
    %634 = vmatpush1.msra.mxu0 0.0
    %635 = vmatprep.mubr.f32.mxu0 0.0
    %636 = vmatmul.mubr.f32.gmra.mrb[0].mxu0 %v569
    %v637 = vpop.f32.mrb[0].mxu0
    %v638 = vadd.f32 0.0, %v637
    %v639 = vpop.f32.mrb[0].mxu0
    %640 = vdwg.mxu0
    %v641 = vadd.f32 %v396, %v638
    %v642 = vadd.f32 %v641, %v134
    %s643 = scalar_lea.vmem [#allocation11], 8
    %644 = vst.msk [vmem:[%s643] sm:$0xff] %vm138, %v642
    %s646 = scalar_lea.vmem [#allocation12], 8
    %647 = vst.msk [vmem:[%s646] sm:$0xff] %vm212, %v568
    %s648 = scalar_lea.vmem [#allocation5], 16
    %v649 = vld [vmem:[%s648] sm:$0xff]
    %v651 = vsel %vm138, %v649, 0
    %653 = vmatprep.subr.mxu0 0.0
    %654 = vmatpush1.msra.mxu0 %v99
    %655 = vmatprep.subr.mxu0 0.0
    %656 = vmatpush1.msra.mxu0 %v100
    %657 = vmatprep.subr.mxu0 0.0
    %658 = vmatpush1.msra.mxu0 %v101
    %659 = vmatprep.subr.mxu0 0.0
    %660 = vmatpush1.msra.mxu0 %v102
    %661 = vmatprep.subr.mxu0 0.0
    %662 = vmatpush1.msra.mxu0 %v103
    %663 = vmatprep.subr.mxu0 0.0
    %664 = vmatpush1.msra.mxu0 %v104
    %665 = vmatprep.subr.mxu0 0.0
    %666 = vmatpush1.msra.mxu0 %v105
    %667 = vmatprep.subr.mxu0 0.0
    %668 = vmatpush1.msra.mxu0 %v106
    %669 = vmatprep.subr.mxu0 0.0
    %670 = vmatpush1.msra.mxu0 0.0
    %671 = vmatprep.subr.mxu0 0.0
    %672 = vmatpush1.msra.mxu0 0.0
    %673 = vmatprep.subr.mxu0 0.0
    %674 = vmatpush1.msra.mxu0 0.0
    %675 = vmatprep.subr.mxu0 0.0
    %676 = vmatpush1.msra.mxu0 0.0
    %677 = vmatprep.subr.mxu0 0.0
    %678 = vmatpush1.msra.mxu0 0.0
    %679 = vmatprep.subr.mxu0 0.0
    %680 = vmatpush1.msra.mxu0 0.0
    %681 = vmatprep.subr.mxu0 0.0
    %682 = vmatpush1.msra.mxu0 0.0
    %683 = vmatprep.subr.mxu0 0.0
    %684 = vmatpush1.msra.mxu0 0.0
    %685 = vmatprep.subr.mxu0 0.0
    %686 = vmatpush1.msra.mxu0 0.0
    %687 = vmatprep.subr.mxu0 0.0
    %688 = vmatpush1.msra.mxu0 0.0
    %689 = vmatprep.subr.mxu0 0.0
    %690 = vmatpush1.msra.mxu0 0.0
    %691 = vmatprep.subr.mxu0 0.0
    %692 = vmatpush1.msra.mxu0 0.0
    %693 = vmatprep.subr.mxu0 0.0
    %694 = vmatpush1.msra.mxu0 0.0
    %695 = vmatprep.subr.mxu0 0.0
    %696 = vmatpush1.msra.mxu0 0.0
    %697 = vmatprep.subr.mxu0 0.0
    %698 = vmatpush1.msra.mxu0 0.0
    %699 = vmatprep.subr.mxu0 0.0
    %700 = vmatpush1.msra.mxu0 0.0
    %701 = vmatprep.subr.mxu0 0.0
    %702 = vmatpush1.msra.mxu0 0.0
    %703 = vmatprep.subr.mxu0 0.0
    %704 = vmatpush1.msra.mxu0 0.0
    %705 = vmatprep.subr.mxu0 0.0
    %706 = vmatpush1.msra.mxu0 0.0
    %707 = vmatprep.subr.mxu0 0.0
    %708 = vmatpush1.msra.mxu0 0.0
    %709 = vmatprep.subr.mxu0 0.0
    %710 = vmatpush1.msra.mxu0 0.0
    %711 = vmatprep.subr.mxu0 0.0
    %712 = vmatpush1.msra.mxu0 0.0
    %713 = vmatprep.subr.mxu0 0.0
    %714 = vmatpush1.msra.mxu0 0.0
    %715 = vmatprep.subr.mxu0 0.0
    %716 = vmatpush1.msra.mxu0 0.0
    %717 = vmatprep.mubr.f32.mxu0 0.0
    %718 = vmatmul.mubr.f32.gmra.mrb[0].mxu0 %v651
    %v719 = vpop.f32.mrb[0].mxu0
    %v720 = vadd.f32 %v120, %v719
    %v721 = vpop.f32.mrb[0].mxu0
    %722 = vdwg.mxu0
    %723 = vmatprep.subr.mxu0 0.0
    %724 = vmatpush1.msra.mxu0 %v107
    %725 = vmatprep.subr.mxu0 0.0
    %726 = vmatpush1.msra.mxu0 %v108
    %727 = vmatprep.subr.mxu0 0.0
    %728 = vmatpush1.msra.mxu0 %v109
    %729 = vmatprep.subr.mxu0 0.0
    %730 = vmatpush1.msra.mxu0 %v110
    %731 = vmatprep.subr.mxu0 0.0
    %732 = vmatpush1.msra.mxu0 0.0
    %733 = vmatprep.subr.mxu0 0.0
    %734 = vmatpush1.msra.mxu0 0.0
    %735 = vmatprep.subr.mxu0 0.0
    %736 = vmatpush1.msra.mxu0 0.0
    %737 = vmatprep.subr.mxu0 0.0
    %738 = vmatpush1.msra.mxu0 0.0
    %739 = vmatprep.subr.mxu0 0.0
    %740 = vmatpush1.msra.mxu0 0.0
    %741 = vmatprep.subr.mxu0 0.0
    %742 = vmatpush1.msra.mxu0 0.0
    %743 = vmatprep.subr.mxu0 0.0
    %744 = vmatpush1.msra.mxu0 0.0
    %745 = vmatprep.subr.mxu0 0.0
    %746 = vmatpush1.msra.mxu0 0.0
    %747 = vmatprep.subr.mxu0 0.0
    %748 = vmatpush1.msra.mxu0 0.0
    %749 = vmatprep.subr.mxu0 0.0
    %750 = vmatpush1.msra.mxu0 0.0
    %751 = vmatprep.subr.mxu0 0.0
    %752 = vmatpush1.msra.mxu0 0.0
    %753 = vmatprep.subr.mxu0 0.0
    %754 = vmatpush1.msra.mxu0 0.0
    %755 = vmatprep.subr.mxu0 0.0
    %756 = vmatpush1.msra.mxu0 0.0
    %757 = vmatprep.subr.mxu0 0.0
    %758 = vmatpush1.msra.mxu0 0.0
    %759 = vmatprep.subr.mxu0 0.0
    %760 = vmatpush1.msra.mxu0 0.0
    %761 = vmatprep.subr.mxu0 0.0
    %762 = vmatpush1.msra.mxu0 0.0
    %763 = vmatprep.subr.mxu0 0.0
    %764 = vmatpush1.msra.mxu0 0.0
    %765 = vmatprep.subr.mxu0 0.0
    %766 = vmatpush1.msra.mxu0 0.0
    %767 = vmatprep.subr.mxu0 0.0
    %768 = vmatpush1.msra.mxu0 0.0
    %769 = vmatprep.subr.mxu0 0.0
    %770 = vmatpush1.msra.mxu0 0.0
    %771 = vmatprep.subr.mxu0 0.0
    %772 = vmatpush1.msra.mxu0 0.0
    %773 = vmatprep.subr.mxu0 0.0
    %774 = vmatpush1.msra.mxu0 0.0
    %775 = vmatprep.subr.mxu0 0.0
    %776 = vmatpush1.msra.mxu0 0.0
    %777 = vmatprep.subr.mxu0 0.0
    %778 = vmatpush1.msra.mxu0 0.0
    %779 = vmatprep.subr.mxu0 0.0
    %780 = vmatpush1.msra.mxu0 0.0
    %781 = vmatprep.subr.mxu0 0.0
    %782 = vmatpush1.msra.mxu0 0.0
    %783 = vmatprep.subr.mxu0 0.0
    %784 = vmatpush1.msra.mxu0 0.0
    %785 = vmatprep.subr.mxu0 0.0
    %786 = vmatpush1.msra.mxu0 0.0
    %787 = vmatprep.mubr.f32.mxu0 0.0
    %788 = vmatmul.mubr.f32.gmra.mrb[0].mxu0 %v569
    %v789 = vpop.f32.mrb[0].mxu0
    %v790 = vadd.f32 %v127, %v789
    %v791 = vpop.f32.mrb[0].mxu0
    %792 = vdwg.mxu0
    %v793 = vadd.f32 %v720, %v790
    %v794 = vxor.u32 %v793, 2147483648
    %v795 = vmul.f32 %v794, 1.442695
    %v796 = vpow.pop %v795
    %v797 = vadd.f32 %v796, 1.0
    %v798 = vrcp.pop %v797
    %v799 = vmul.f32 1.0, %v798
    %801 = vrot.lane.b32.xlu0 %v790, 64
    %v802 = vpop.permute.xlu0 %801
    %v804 = vmul.f32 %v799, %v802
    %806 = vrot.lane.b32.xlu0 %v804, 64
    %v807 = vpop.permute.xlu0 %806
    %v809 = vadd.f32 %v720, %v807
    %v810 = vtanh.pop %v809
    %v811 = vsub.f32 1.0, %v799
    %813 = vrot.lane.b32.xlu0 %v810, 96
    %v814 = vpop.permute.xlu0 %813
    %v816 = vmul.f32 %v811, %v814
    %v817 = vmul.f32 %v799, %v565
    %v818 = vadd.f32 %v816, %v817
    %820 = vrot.lane.b32.xlu0 %v818, 96
    %v821 = vpop.permute.xlu0 %820
    %v822 = vsel %vm212, %v821, 0
    %824 = vmatprep.subr.mxu0 0.0
    %825 = vmatpush1.msra.mxu0 %v111
    %826 = vmatprep.subr.mxu0 0.0
    %827 = vmatpush1.msra.mxu0 %v112
    %828 = vmatprep.subr.mxu0 0.0
    %829 = vmatpush1.msra.mxu0 %v113
    %830 = vmatprep.subr.mxu0 0.0
    %831 = vmatpush1.msra.mxu0 %v114
    %832 = vmatprep.subr.mxu0 0.0
    %833 = vmatpush1.msra.mxu0 0.0
    %834 = vmatprep.subr.mxu0 0.0
    %835 = vmatpush1.msra.mxu0 0.0
    %836 = vmatprep.subr.mxu0 0.0
    %837 = vmatpush1.msra.mxu0 0.0
    %838 = vmatprep.subr.mxu0 0.0
    %839 = vmatpush1.msra.mxu0 0.0
    %840 = vmatprep.subr.mxu0 0.0
    %841 = vmatpush1.msra.mxu0 0.0
    %842 = vmatprep.subr.mxu0 0.0
    %843 = vmatpush1.msra.mxu0 0.0
    %844 = vmatprep.subr.mxu0 0.0
    %845 = vmatpush1.msra.mxu0 0.0
    %846 = vmatprep.subr.mxu0 0.0
    %847 = vmatpush1.msra.mxu0 0.0
    %848 = vmatprep.subr.mxu0 0.0
    %849 = vmatpush1.msra.mxu0 0.0
    %850 = vmatprep.subr.mxu0 0.0
    %851 = vmatpush1.msra.mxu0 0.0
    %852 = vmatprep.subr.mxu0 0.0
    %853 = vmatpush1.msra.mxu0 0.0
    %854 = vmatprep.subr.mxu0 0.0
    %855 = vmatpush1.msra.mxu0 0.0
    %856 = vmatprep.subr.mxu0 0.0
    %857 = vmatpush1.msra.mxu0 0.0
    %858 = vmatprep.subr.mxu0 0.0
    %859 = vmatpush1.msra.mxu0 0.0
    %860 = vmatprep.subr.mxu0 0.0
    %861 = vmatpush1.msra.mxu0 0.0
    %862 = vmatprep.subr.mxu0 0.0
    %863 = vmatpush1.msra.mxu0 0.0
    %864 = vmatprep.subr.mxu0 0.0
    %865 = vmatpush1.msra.mxu0 0.0
    %866 = vmatprep.subr.mxu0 0.0
    %867 = vmatpush1.msra.mxu0 0.0
    %868 = vmatprep.subr.mxu0 0.0
    %869 = vmatpush1.msra.mxu0 0.0
    %870 = vmatprep.subr.mxu0 0.0
    %871 = vmatpush1.msra.mxu0 0.0
    %872 = vmatprep.subr.mxu0 0.0
    %873 = vmatpush1.msra.mxu0 0.0
    %874 = vmatprep.subr.mxu0 0.0
    %875 = vmatpush1.msra.mxu0 0.0
    %876 = vmatprep.subr.mxu0 0.0
    %877 = vmatpush1.msra.mxu0 0.0
    %878 = vmatprep.subr.mxu0 0.0
    %879 = vmatpush1.msra.mxu0 0.0
    %880 = vmatprep.subr.mxu0 0.0
    %881 = vmatpush1.msra.mxu0 0.0
    %882 = vmatprep.subr.mxu0 0.0
    %883 = vmatpush1.msra.mxu0 0.0
    %884 = vmatprep.subr.mxu0 0.0
    %885 = vmatpush1.msra.mxu0 0.0
    %886 = vmatprep.subr.mxu0 0.0
    %887 = vmatpush1.msra.mxu0 0.0
    %888 = vmatprep.mubr.f32.mxu0 0.0
    %889 = vmatmul.mubr.f32.gmra.mrb[0].mxu0 %v822
    %v890 = vpop.f32.mrb[0].mxu0
    %v891 = vadd.f32 0.0, %v890
    %v892 = vpop.f32.mrb[0].mxu0
    %893 = vdwg.mxu0
    %v894 = vadd.f32 %v649, %v891
    %v895 = vadd.f32 %v894, %v134
    %s896 = scalar_lea.vmem [#allocation11], 16
    %897 = vst.msk [vmem:[%s896] sm:$0xff] %vm138, %v895
    %s899 = scalar_lea.vmem [#allocation12], 16
    %900 = vst.msk [vmem:[%s899] sm:$0xff] %vm212, %v821
    %s901 = scalar_lea.vmem [#allocation5], 24
    %v902 = vld [vmem:[%s901] sm:$0xff]
    %v904 = vsel %vm138, %v902, 0
    %906 = vmatprep.subr.mxu0 0.0
    %907 = vmatpush1.msra.mxu0 %v99
    %908 = vmatprep.subr.mxu0 0.0
    %909 = vmatpush1.msra.mxu0 %v100
    %910 = vmatprep.subr.mxu0 0.0
    %911 = vmatpush1.msra.mxu0 %v101
    %912 = vmatprep.subr.mxu0 0.0
    %913 = vmatpush1.msra.mxu0 %v102
    %914 = vmatprep.subr.mxu0 0.0
    %915 = vmatpush1.msra.mxu0 %v103
    %916 = vmatprep.subr.mxu0 0.0
    %917 = vmatpush1.msra.mxu0 %v104
    %918 = vmatprep.subr.mxu0 0.0
    %919 = vmatpush1.msra.mxu0 %v105
    %920 = vmatprep.subr.mxu0 0.0
    %921 = vmatpush1.msra.mxu0 %v106
    %922 = vmatprep.subr.mxu0 0.0
    %923 = vmatpush1.msra.mxu0 0.0
    %924 = vmatprep.subr.mxu0 0.0
    %925 = vmatpush1.msra.mxu0 0.0
    %926 = vmatprep.subr.mxu0 0.0
    %927 = vmatpush1.msra.mxu0 0.0
    %928 = vmatprep.subr.mxu0 0.0
    %929 = vmatpush1.msra.mxu0 0.0
    %930 = vmatprep.subr.mxu0 0.0
    %931 = vmatpush1.msra.mxu0 0.0
    %932 = vmatprep.subr.mxu0 0.0
    %933 = vmatpush1.msra.mxu0 0.0
    %934 = vmatprep.subr.mxu0 0.0
    %935 = vmatpush1.msra.mxu0 0.0
    %936 = vmatprep.subr.mxu0 0.0
    %937 = vmatpush1.msra.mxu0 0.0
    %938 = vmatprep.subr.mxu0 0.0
    %939 = vmatpush1.msra.mxu0 0.0
    %940 = vmatprep.subr.mxu0 0.0
    %941 = vmatpush1.msra.mxu0 0.0
    %942 = vmatprep.subr.mxu0 0.0
    %943 = vmatpush1.msra.mxu0 0.0
    %944 = vmatprep.subr.mxu0 0.0
    %945 = vmatpush1.msra.mxu0 0.0
    %946 = vmatprep.subr.mxu0 0.0
    %947 = vmatpush1.msra.mxu0 0.0
    %948 = vmatprep.subr.mxu0 0.0
    %949 = vmatpush1.msra.mxu0 0.0
    %950 = vmatprep.subr.mxu0 0.0
    %951 = vmatpush1.msra.mxu0 0.0
    %952 = vmatprep.subr.mxu0 0.0
    %953 = vmatpush1.msra.mxu0 0.0
    %954 = vmatprep.subr.mxu0 0.0
    %955 = vmatpush1.msra.mxu0 0.0
    %956 = vmatprep.subr.mxu0 0.0
    %957 = vmatpush1.msra.mxu0 0.0
    %958 = vmatprep.subr.mxu0 0.0
    %959 = vmatpush1.msra.mxu0 0.0
    %960 = vmatprep.subr.mxu0 0.0
    %961 = vmatpush1.msra.mxu0 0.0
    %962 = vmatprep.subr.mxu0 0.0
    %963 = vmatpush1.msra.mxu0 0.0
    %964 = vmatprep.subr.mxu0 0.0
    %965 = vmatpush1.msra.mxu0 0.0
    %966 = vmatprep.subr.mxu0 0.0
    %967 = vmatpush1.msra.mxu0 0.0
    %968 = vmatprep.subr.mxu0 0.0
    %969 = vmatpush1.msra.mxu0 0.0
    %970 = vmatprep.mubr.f32.mxu0 0.0
    %971 = vmatmul.mubr.f32.gmra.mrb[0].mxu0 %v904
    %v972 = vpop.f32.mrb[0].mxu0
    %v973 = vadd.f32 %v120, %v972
    %v974 = vpop.f32.mrb[0].mxu0
    %975 = vdwg.mxu0
    %976 = vmatprep.subr.mxu0 0.0
    %977 = vmatpush1.msra.mxu0 %v107
    %978 = vmatprep.subr.mxu0 0.0
    %979 = vmatpush1.msra.mxu0 %v108
    %980 = vmatprep.subr.mxu0 0.0
    %981 = vmatpush1.msra.mxu0 %v109
    %982 = vmatprep.subr.mxu0 0.0
    %983 = vmatpush1.msra.mxu0 %v110
    %984 = vmatprep.subr.mxu0 0.0
    %985 = vmatpush1.msra.mxu0 0.0
    %986 = vmatprep.subr.mxu0 0.0
    %987 = vmatpush1.msra.mxu0 0.0
    %988 = vmatprep.subr.mxu0 0.0
    %989 = vmatpush1.msra.mxu0 0.0
    %990 = vmatprep.subr.mxu0 0.0
    %991 = vmatpush1.msra.mxu0 0.0
    %992 = vmatprep.subr.mxu0 0.0
    %993 = vmatpush1.msra.mxu0 0.0
    %994 = vmatprep.subr.mxu0 0.0
    %995 = vmatpush1.msra.mxu0 0.0
    %996 = vmatprep.subr.mxu0 0.0
    %997 = vmatpush1.msra.mxu0 0.0
    %998 = vmatprep.subr.mxu0 0.0
    %999 = vmatpush1.msra.mxu0 0.0
    %1000 = vmatprep.subr.mxu0 0.0
    %1001 = vmatpush1.msra.mxu0 0.0
    %1002 = vmatprep.subr.mxu0 0.0
    %1003 = vmatpush1.msra.mxu0 0.0
    %1004 = vmatprep.subr.mxu0 0.0
    %1005 = vmatpush1.msra.mxu0 0.0
    %1006 = vmatprep.subr.mxu0 0.0
    %1007 = vmatpush1.msra.mxu0 0.0
    %1008 = vmatprep.subr.mxu0 0.0
    %1009 = vmatpush1.msra.mxu0 0.0
    %1010 = vmatprep.subr.mxu0 0.0
    %1011 = vmatpush1.msra.mxu0 0.0
    %1012 = vmatprep.subr.mxu0 0.0
    %1013 = vmatpush1.msra.mxu0 0.0
    %1014 = vmatprep.subr.mxu0 0.0
    %1015 = vmatpush1.msra.mxu0 0.0
    %1016 = vmatprep.subr.mxu0 0.0
    %1017 = vmatpush1.msra.mxu0 0.0
    %1018 = vmatprep.subr.mxu0 0.0
    %1019 = vmatpush1.msra.mxu0 0.0
    %1020 = vmatprep.subr.mxu0 0.0
    %1021 = vmatpush1.msra.mxu0 0.0
    %1022 = vmatprep.subr.mxu0 0.0
    %1023 = vmatpush1.msra.mxu0 0.0
    %1024 = vmatprep.subr.mxu0 0.0
    %1025 = vmatpush1.msra.mxu0 0.0
    %1026 = vmatprep.subr.mxu0 0.0
    %1027 = vmatpush1.msra.mxu0 0.0
    %1028 = vmatprep.subr.mxu0 0.0
    %1029 = vmatpush1.msra.mxu0 0.0
    %1030 = vmatprep.subr.mxu0 0.0
    %1031 = vmatpush1.msra.mxu0 0.0
    %1032 = vmatprep.subr.mxu0 0.0
    %1033 = vmatpush1.msra.mxu0 0.0
    %1034 = vmatprep.subr.mxu0 0.0
    %1035 = vmatpush1.msra.mxu0 0.0
    %1036 = vmatprep.subr.mxu0 0.0
    %1037 = vmatpush1.msra.mxu0 0.0
    %1038 = vmatprep.subr.mxu0 0.0
    %1039 = vmatpush1.msra.mxu0 0.0
    %1040 = vmatprep.mubr.f32.mxu0 0.0
    %1041 = vmatmul.mubr.f32.gmra.mrb[0].mxu0 %v822
    %v1042 = vpop.f32.mrb[0].mxu0
    %v1043 = vadd.f32 %v127, %v1042
    %v1044 = vpop.f32.mrb[0].mxu0
    %1045 = vdwg.mxu0
    %v1046 = vadd.f32 %v973, %v1043
    %v1047 = vxor.u32 %v1046, 2147483648
    %v1048 = vmul.f32 %v1047, 1.442695
    %v1049 = vpow.pop %v1048
    %v1050 = vadd.f32 %v1049, 1.0
    %v1051 = vrcp.pop %v1050
    %v1052 = vmul.f32 1.0, %v1051
    %1054 = vrot.lane.b32.xlu0 %v1043, 64
    %v1055 = vpop.permute.xlu0 %1054
    %v1057 = vmul.f32 %v1052, %v1055
    %1059 = vrot.lane.b32.xlu0 %v1057, 64
    %v1060 = vpop.permute.xlu0 %1059
    %v1062 = vadd.f32 %v973, %v1060
    %v1063 = vtanh.pop %v1062
    %v1064 = vsub.f32 1.0, %v1052
    %1066 = vrot.lane.b32.xlu0 %v1063, 96
    %v1067 = vpop.permute.xlu0 %1066
    %v1069 = vmul.f32 %v1064, %v1067
    %v1070 = vmul.f32 %v1052, %v818
    %v1071 = vadd.f32 %v1069, %v1070
    %1073 = vrot.lane.b32.xlu0 %v1071, 96
    %v1074 = vpop.permute.xlu0 %1073
    %v1075 = vsel %vm212, %v1074, 0
    %1077 = vmatprep.subr.mxu0 0.0
    %1078 = vmatpush1.msra.mxu0 %v111
    %1079 = vmatprep.subr.mxu0 0.0
    %1080 = vmatpush1.msra.mxu0 %v112
    %1081 = vmatprep.subr.mxu0 0.0
    %1082 = vmatpush1.msra.mxu0 %v113
    %1083 = vmatprep.subr.mxu0 0.0
    %1084 = vmatpush1.msra.mxu0 %v114
    %1085 = vmatprep.subr.mxu0 0.0
    %1086 = vmatpush1.msra.mxu0 0.0
    %1087 = vmatprep.subr.mxu0 0.0
    %1088 = vmatpush1.msra.mxu0 0.0
    %1089 = vmatprep.subr.mxu0 0.0
    %1090 = vmatpush1.msra.mxu0 0.0
    %1091 = vmatprep.subr.mxu0 0.0
    %1092 = vmatpush1.msra.mxu0 0.0
    %1093 = vmatprep.subr.mxu0 0.0
    %1094 = vmatpush1.msra.mxu0 0.0
    %1095 = vmatprep.subr.mxu0 0.0
    %1096 = vmatpush1.msra.mxu0 0.0
    %1097 = vmatprep.subr.mxu0 0.0
    %1098 = vmatpush1.msra.mxu0 0.0
    %1099 = vmatprep.subr.mxu0 0.0
    %1100 = vmatpush1.msra.mxu0 0.0
    %1101 = vmatprep.subr.mxu0 0.0
    %1102 = vmatpush1.msra.mxu0 0.0
    %1103 = vmatprep.subr.mxu0 0.0
    %1104 = vmatpush1.msra.mxu0 0.0
    %1105 = vmatprep.subr.mxu0 0.0
    %1106 = vmatpush1.msra.mxu0 0.0
    %1107 = vmatprep.subr.mxu0 0.0
    %1108 = vmatpush1.msra.mxu0 0.0
    %1109 = vmatprep.subr.mxu0 0.0
    %1110 = vmatpush1.msra.mxu0 0.0
    %1111 = vmatprep.subr.mxu0 0.0
    %1112 = vmatpush1.msra.mxu0 0.0
    %1113 = vmatprep.subr.mxu0 0.0
    %1114 = vmatpush1.msra.mxu0 0.0
    %1115 = vmatprep.subr.mxu0 0.0
    %1116 = vmatpush1.msra.mxu0 0.0
    %1117 = vmatprep.subr.mxu0 0.0
    %1118 = vmatpush1.msra.mxu0 0.0
    %1119 = vmatprep.subr.mxu0 0.0
    %1120 = vmatpush1.msra.mxu0 0.0
    %1121 = vmatprep.subr.mxu0 0.0
    %1122 = vmatpush1.msra.mxu0 0.0
    %1123 = vmatprep.subr.mxu0 0.0
    %1124 = vmatpush1.msra.mxu0 0.0
    %1125 = vmatprep.subr.mxu0 0.0
    %1126 = vmatpush1.msra.mxu0 0.0
    %1127 = vmatprep.subr.mxu0 0.0
    %1128 = vmatpush1.msra.mxu0 0.0
    %1129 = vmatprep.subr.mxu0 0.0
    %1130 = vmatpush1.msra.mxu0 0.0
    %1131 = vmatprep.subr.mxu0 0.0
    %1132 = vmatpush1.msra.mxu0 0.0
    %1133 = vmatprep.subr.mxu0 0.0
    %1134 = vmatpush1.msra.mxu0 0.0
    %1135 = vmatprep.subr.mxu0 0.0
    %1136 = vmatpush1.msra.mxu0 0.0
    %1137 = vmatprep.subr.mxu0 0.0
    %1138 = vmatpush1.msra.mxu0 0.0
    %1139 = vmatprep.subr.mxu0 0.0
    %1140 = vmatpush1.msra.mxu0 0.0
    %1141 = vmatprep.mubr.f32.mxu0 0.0
    %1142 = vmatmul.mubr.f32.gmra.mrb[0].mxu0 %v1075
    %v1143 = vpop.f32.mrb[0].mxu0
    %v1144 = vadd.f32 0.0, %v1143
    %v1145 = vpop.f32.mrb[0].mxu0
    %1146 = vdwg.mxu0
    %v1147 = vadd.f32 %v902, %v1144
    %v1148 = vadd.f32 %v1147, %v134
    %s1149 = scalar_lea.vmem [#allocation11], 24
    %1150 = vst.msk [vmem:[%s1149] sm:$0xff] %vm138, %v1148
    %s1152 = scalar_lea.vmem [#allocation12], 24
    %1153 = vst.msk [vmem:[%s1152] sm:$0xff] %vm212, %v1074
    %s1154 = scalar_lea.vmem [#allocation5], 32
    %v1155 = vld [vmem:[%s1154] sm:$0xff]
    %v1157 = vsel %vm138, %v1155, 0
    %1159 = vmatprep.subr.mxu0 0.0
    %1160 = vmatpush1.msra.mxu0 %v99
    %1161 = vmatprep.subr.mxu0 0.0
    %1162 = vmatpush1.msra.mxu0 %v100
    %1163 = vmatprep.subr.mxu0 0.0
    %1164 = vmatpush1.msra.mxu0 %v101
    %1165 = vmatprep.subr.mxu0 0.0
    %1166 = vmatpush1.msra.mxu0 %v102
    %1167 = vmatprep.subr.mxu0 0.0
    %1168 = vmatpush1.msra.mxu0 %v103
    %1169 = vmatprep.subr.mxu0 0.0
    %1170 = vmatpush1.msra.mxu0 %v104
    %1171 = vmatprep.subr.mxu0 0.0
    %1172 = vmatpush1.msra.mxu0 %v105
    %1173 = vmatprep.subr.mxu0 0.0
    %1174 = vmatpush1.msra.mxu0 %v106
    %1175 = vmatprep.subr.mxu0 0.0
    %1176 = vmatpush1.msra.mxu0 0.0
    %1177 = vmatprep.subr.mxu0 0.0
    %1178 = vmatpush1.msra.mxu0 0.0
    %1179 = vmatprep.subr.mxu0 0.0
    %1180 = vmatpush1.msra.mxu0 0.0
    %1181 = vmatprep.subr.mxu0 0.0
    %1182 = vmatpush1.msra.mxu0 0.0
    %1183 = vmatprep.subr.mxu0 0.0
    %1184 = vmatpush1.msra.mxu0 0.0
    %1185 = vmatprep.subr.mxu0 0.0
    %1186 = vmatpush1.msra.mxu0 0.0
    %1187 = vmatprep.subr.mxu0 0.0
    %1188 = vmatpush1.msra.mxu0 0.0
    %1189 = vmatprep.subr.mxu0 0.0
    %1190 = vmatpush1.msra.mxu0 0.0
    %1191 = vmatprep.subr.mxu0 0.0
    %1192 = vmatpush1.msra.mxu0 0.0
    %1193 = vmatprep.subr.mxu0 0.0
    %1194 = vmatpush1.msra.mxu0 0.0
    %1195 = vmatprep.subr.mxu0 0.0
    %1196 = vmatpush1.msra.mxu0 0.0
    %1197 = vmatprep.subr.mxu0 0.0
    %1198 = vmatpush1.msra.mxu0 0.0
    %1199 = vmatprep.subr.mxu0 0.0
    %1200 = vmatpush1.msra.mxu0 0.0
    %1201 = vmatprep.subr.mxu0 0.0
    %1202 = vmatpush1.msra.mxu0 0.0
    %1203 = vmatprep.subr.mxu0 0.0
    %1204 = vmatpush1.msra.mxu0 0.0
    %1205 = vmatprep.subr.mxu0 0.0
    %1206 = vmatpush1.msra.mxu0 0.0
    %1207 = vmatprep.subr.mxu0 0.0
    %1208 = vmatpush1.msra.mxu0 0.0
    %1209 = vmatprep.subr.mxu0 0.0
    %1210 = vmatpush1.msra.mxu0 0.0
    %1211 = vmatprep.subr.mxu0 0.0
    %1212 = vmatpush1.msra.mxu0 0.0
    %1213 = vmatprep.subr.mxu0 0.0
    %1214 = vmatpush1.msra.mxu0 0.0
    %1215 = vmatprep.subr.mxu0 0.0
    %1216 = vmatpush1.msra.mxu0 0.0
    %1217 = vmatprep.subr.mxu0 0.0
    %1218 = vmatpush1.msra.mxu0 0.0
    %1219 = vmatprep.subr.mxu0 0.0
    %1220 = vmatpush1.msra.mxu0 0.0
    %1221 = vmatprep.subr.mxu0 0.0
    %1222 = vmatpush1.msra.mxu0 0.0
    %1223 = vmatprep.mubr.f32.mxu0 0.0
    %1224 = vmatmul.mubr.f32.gmra.mrb[0].mxu0 %v1157
    %v1225 = vpop.f32.mrb[0].mxu0
    %v1226 = vadd.f32 %v120, %v1225
    %v1227 = vpop.f32.mrb[0].mxu0
    %1228 = vdwg.mxu0
    %1229 = vmatprep.subr.mxu0 0.0
    %1230 = vmatpush1.msra.mxu0 %v107
    %1231 = vmatprep.subr.mxu0 0.0
    %1232 = vmatpush1.msra.mxu0 %v108
    %1233 = vmatprep.subr.mxu0 0.0
    %1234 = vmatpush1.msra.mxu0 %v109
    %1235 = vmatprep.subr.mxu0 0.0
    %1236 = vmatpush1.msra.mxu0 %v110
    %1237 = vmatprep.subr.mxu0 0.0
    %1238 = vmatpush1.msra.mxu0 0.0
    %1239 = vmatprep.subr.mxu0 0.0
    %1240 = vmatpush1.msra.mxu0 0.0
    %1241 = vmatprep.subr.mxu0 0.0
    %1242 = vmatpush1.msra.mxu0 0.0
    %1243 = vmatprep.subr.mxu0 0.0
    %1244 = vmatpush1.msra.mxu0 0.0
    %1245 = vmatprep.subr.mxu0 0.0
    %1246 = vmatpush1.msra.mxu0 0.0
    %1247 = vmatprep.subr.mxu0 0.0
    %1248 = vmatpush1.msra.mxu0 0.0
    %1249 = vmatprep.subr.mxu0 0.0
    %1250 = vmatpush1.msra.mxu0 0.0
    %1251 = vmatprep.subr.mxu0 0.0
    %1252 = vmatpush1.msra.mxu0 0.0
    %1253 = vmatprep.subr.mxu0 0.0
    %1254 = vmatpush1.msra.mxu0 0.0
    %1255 = vmatprep.subr.mxu0 0.0
    %1256 = vmatpush1.msra.mxu0 0.0
    %1257 = vmatprep.subr.mxu0 0.0
    %1258 = vmatpush1.msra.mxu0 0.0
    %1259 = vmatprep.subr.mxu0 0.0
    %1260 = vmatpush1.msra.mxu0 0.0
    %1261 = vmatprep.subr.mxu0 0.0
    %1262 = vmatpush1.msra.mxu0 0.0
    %1263 = vmatprep.subr.mxu0 0.0
    %1264 = vmatpush1.msra.mxu0 0.0
    %1265 = vmatprep.subr.mxu0 0.0
    %1266 = vmatpush1.msra.mxu0 0.0
    %1267 = vmatprep.subr.mxu0 0.0
    %1268 = vmatpush1.msra.mxu0 0.0
    %1269 = vmatprep.subr.mxu0 0.0
    %1270 = vmatpush1.msra.mxu0 0.0
    %1271 = vmatprep.subr.mxu0 0.0
    %1272 = vmatpush1.msra.mxu0 0.0
    %1273 = vmatprep.subr.mxu0 0.0
    %1274 = vmatpush1.msra.mxu0 0.0
    %1275 = vmatprep.subr.mxu0 0.0
    %1276 = vmatpush1.msra.mxu0 0.0
    %1277 = vmatprep.subr.mxu0 0.0
    %1278 = vmatpush1.msra.mxu0 0.0
    %1279 = vmatprep.subr.mxu0 0.0
    %1280 = vmatpush1.msra.mxu0 0.0
    %1281 = vmatprep.subr.mxu0 0.0
    %1282 = vmatpush1.msra.mxu0 0.0
    %1283 = vmatprep.subr.mxu0 0.0
    %1284 = vmatpush1.msra.mxu0 0.0
    %1285 = vmatprep.subr.mxu0 0.0
    %1286 = vmatpush1.msra.mxu0 0.0
    %1287 = vmatprep.subr.mxu0 0.0
    %1288 = vmatpush1.msra.mxu0 0.0
    %1289 = vmatprep.subr.mxu0 0.0
    %1290 = vmatpush1.msra.mxu0 0.0
    %1291 = vmatprep.subr.mxu0 0.0
    %1292 = vmatpush1.msra.mxu0 0.0
    %1293 = vmatprep.mubr.f32.mxu0 0.0
    %1294 = vmatmul.mubr.f32.gmra.mrb[0].mxu0 %v1075
    %v1295 = vpop.f32.mrb[0].mxu0
    %v1296 = vadd.f32 %v127, %v1295
    %v1297 = vpop.f32.mrb[0].mxu0
    %1298 = vdwg.mxu0
    %v1299 = vadd.f32 %v1226, %v1296
    %v1300 = vxor.u32 %v1299, 2147483648
    %v1301 = vmul.f32 %v1300, 1.442695
    %v1302 = vpow.pop %v1301
    %v1303 = vadd.f32 %v1302, 1.0
    %v1304 = vrcp.pop %v1303
    %v1305 = vmul.f32 1.0, %v1304
    %1307 = vrot.lane.b32.xlu0 %v1296, 64
    %v1308 = vpop.permute.xlu0 %1307
    %v1310 = vmul.f32 %v1305, %v1308
    %1312 = vrot.lane.b32.xlu0 %v1310, 64
    %v1313 = vpop.permute.xlu0 %1312
    %v1315 = vadd.f32 %v1226, %v1313
    %v1316 = vtanh.pop %v1315
    %v1317 = vsub.f32 1.0, %v1305
    %1319 = vrot.lane.b32.xlu0 %v1316, 96
    %v1320 = vpop.permute.xlu0 %1319
    %v1322 = vmul.f32 %v1317, %v1320
    %v1323 = vmul.f32 %v1305, %v1071
    %v1324 = vadd.f32 %v1322, %v1323
    %1326 = vrot.lane.b32.xlu0 %v1324, 96
    %v1327 = vpop.permute.xlu0 %1326
    %v1328 = vsel %vm212, %v1327, 0
    %1330 = vmatprep.subr.mxu0 0.0
    %1331 = vmatpush1.msra.mxu0 %v111
    %1332 = vmatprep.subr.mxu0 0.0
    %1333 = vmatpush1.msra.mxu0 %v112
    %1334 = vmatprep.subr.mxu0 0.0
    %1335 = vmatpush1.msra.mxu0 %v113
    %1336 = vmatprep.subr.mxu0 0.0
    %1337 = vmatpush1.msra.mxu0 %v114
    %1338 = vmatprep.subr.mxu0 0.0
    %1339 = vmatpush1.msra.mxu0 0.0
    %1340 = vmatprep.subr.mxu0 0.0
    %1341 = vmatpush1.msra.mxu0 0.0
    %1342 = vmatprep.subr.mxu0 0.0
    %1343 = vmatpush1.msra.mxu0 0.0
    %1344 = vmatprep.subr.mxu0 0.0
    %1345 = vmatpush1.msra.mxu0 0.0
    %1346 = vmatprep.subr.mxu0 0.0
    %1347 = vmatpush1.msra.mxu0 0.0
    %1348 = vmatprep.subr.mxu0 0.0
    %1349 = vmatpush1.msra.mxu0 0.0
    %1350 = vmatprep.subr.mxu0 0.0
    %1351 = vmatpush1.msra.mxu0 0.0
    %1352 = vmatprep.subr.mxu0 0.0
    %1353 = vmatpush1.msra.mxu0 0.0
    %1354 = vmatprep.subr.mxu0 0.0
    %1355 = vmatpush1.msra.mxu0 0.0
    %1356 = vmatprep.subr.mxu0 0.0
    %1357 = vmatpush1.msra.mxu0 0.0
    %1358 = vmatprep.subr.mxu0 0.0
    %1359 = vmatpush1.msra.mxu0 0.0
    %1360 = vmatprep.subr.mxu0 0.0
    %1361 = vmatpush1.msra.mxu0 0.0
    %1362 = vmatprep.subr.mxu0 0.0
    %1363 = vmatpush1.msra.mxu0 0.0
    %1364 = vmatprep.subr.mxu0 0.0
    %1365 = vmatpush1.msra.mxu0 0.0
    %1366 = vmatprep.subr.mxu0 0.0
    %1367 = vmatpush1.msra.mxu0 0.0
    %1368 = vmatprep.subr.mxu0 0.0
    %1369 = vmatpush1.msra.mxu0 0.0
    %1370 = vmatprep.subr.mxu0 0.0
    %1371 = vmatpush1.msra.mxu0 0.0
    %1372 = vmatprep.subr.mxu0 0.0
    %1373 = vmatpush1.msra.mxu0 0.0
    %1374 = vmatprep.subr.mxu0 0.0
    %1375 = vmatpush1.msra.mxu0 0.0
    %1376 = vmatprep.subr.mxu0 0.0
    %1377 = vmatpush1.msra.mxu0 0.0
    %1378 = vmatprep.subr.mxu0 0.0
    %1379 = vmatpush1.msra.mxu0 0.0
    %1380 = vmatprep.subr.mxu0 0.0
    %1381 = vmatpush1.msra.mxu0 0.0
    %1382 = vmatprep.subr.mxu0 0.0
    %1383 = vmatpush1.msra.mxu0 0.0
    %1384 = vmatprep.subr.mxu0 0.0
    %1385 = vmatpush1.msra.mxu0 0.0
    %1386 = vmatprep.subr.mxu0 0.0
    %1387 = vmatpush1.msra.mxu0 0.0
    %1388 = vmatprep.subr.mxu0 0.0
    %1389 = vmatpush1.msra.mxu0 0.0
    %1390 = vmatprep.subr.mxu0 0.0
    %1391 = vmatpush1.msra.mxu0 0.0
    %1392 = vmatprep.subr.mxu0 0.0
    %1393 = vmatpush1.msra.mxu0 0.0
    %1394 = vmatprep.mubr.f32.mxu0 0.0
    %1395 = vmatmul.mubr.f32.gmra.mrb[0].mxu0 %v1328
    %v1396 = vpop.f32.mrb[0].mxu0
    %v1397 = vadd.f32 0.0, %v1396
    %v1398 = vpop.f32.mrb[0].mxu0
    %1399 = vdwg.mxu0
    %v1400 = vadd.f32 %v1155, %v1397
    %v1401 = vadd.f32 %v1400, %v134
    %s1402 = scalar_lea.vmem [#allocation11], 32
    %1403 = vst.msk [vmem:[%s1402] sm:$0xff] %vm138, %v1401
    %s1405 = scalar_lea.vmem [#allocation12], 32
    %1406 = vst.msk [vmem:[%s1405] sm:$0xff] %vm212, %v1327
    %s1407 = scalar_lea.vmem [#allocation5], 40
    %v1408 = vld [vmem:[%s1407] sm:$0xff]
    %v1410 = vsel %vm138, %v1408, 0
    %1412 = vmatprep.subr.mxu0 0.0
    %1413 = vmatpush1.msra.mxu0 %v99
    %1414 = vmatprep.subr.mxu0 0.0
    %1415 = vmatpush1.msra.mxu0 %v100
    %1416 = vmatprep.subr.mxu0 0.0
    %1417 = vmatpush1.msra.mxu0 %v101
    %1418 = vmatprep.subr.mxu0 0.0
    %1419 = vmatpush1.msra.mxu0 %v102
    %1420 = vmatprep.subr.mxu0 0.0
    %1421 = vmatpush1.msra.mxu0 %v103
    %1422 = vmatprep.subr.mxu0 0.0
    %1423 = vmatpush1.msra.mxu0 %v104
    %1424 = vmatprep.subr.mxu0 0.0
    %1425 = vmatpush1.msra.mxu0 %v105
    %1426 = vmatprep.subr.mxu0 0.0
    %1427 = vmatpush1.msra.mxu0 %v106
    %1428 = vmatprep.subr.mxu0 0.0
    %1429 = vmatpush1.msra.mxu0 0.0
    %1430 = vmatprep.subr.mxu0 0.0
    %1431 = vmatpush1.msra.mxu0 0.0
    %1432 = vmatprep.subr.mxu0 0.0
    %1433 = vmatpush1.msra.mxu0 0.0
    %1434 = vmatprep.subr.mxu0 0.0
    %1435 = vmatpush1.msra.mxu0 0.0
    %1436 = vmatprep.subr.mxu0 0.0
    %1437 = vmatpush1.msra.mxu0 0.0
    %1438 = vmatprep.subr.mxu0 0.0
    %1439 = vmatpush1.msra.mxu0 0.0
    %1440 = vmatprep.subr.mxu0 0.0
    %1441 = vmatpush1.msra.mxu0 0.0
    %1442 = vmatprep.subr.mxu0 0.0
    %1443 = vmatpush1.msra.mxu0 0.0
    %1444 = vmatprep.subr.mxu0 0.0
    %1445 = vmatpush1.msra.mxu0 0.0
    %1446 = vmatprep.subr.mxu0 0.0
    %1447 = vmatpush1.msra.mxu0 0.0
    %1448 = vmatprep.subr.mxu0 0.0
    %1449 = vmatpush1.msra.mxu0 0.0
    %1450 = vmatprep.subr.mxu0 0.0
    %1451 = vmatpush1.msra.mxu0 0.0
    %1452 = vmatprep.subr.mxu0 0.0
    %1453 = vmatpush1.msra.mxu0 0.0
    %1454 = vmatprep.subr.mxu0 0.0
    %1455 = vmatpush1.msra.mxu0 0.0
    %1456 = vmatprep.subr.mxu0 0.0
    %1457 = vmatpush1.msra.mxu0 0.0
    %1458 = vmatprep.subr.mxu0 0.0
    %1459 = vmatpush1.msra.mxu0 0.0
    %1460 = vmatprep.subr.mxu0 0.0
    %1461 = vmatpush1.msra.mxu0 0.0
    %1462 = vmatprep.subr.mxu0 0.0
    %1463 = vmatpush1.msra.mxu0 0.0
    %1464 = vmatprep.subr.mxu0 0.0
    %1465 = vmatpush1.msra.mxu0 0.0
    %1466 = vmatprep.subr.mxu0 0.0
    %1467 = vmatpush1.msra.mxu0 0.0
    %1468 = vmatprep.subr.mxu0 0.0
    %1469 = vmatpush1.msra.mxu0 0.0
    %1470 = vmatprep.subr.mxu0 0.0
    %1471 = vmatpush1.msra.mxu0 0.0
    %1472 = vmatprep.subr.mxu0 0.0
    %1473 = vmatpush1.msra.mxu0 0.0
    %1474 = vmatprep.subr.mxu0 0.0
    %1475 = vmatpush1.msra.mxu0 0.0
    %1476 = vmatprep.mubr.f32.mxu0 0.0
    %1477 = vmatmul.mubr.f32.gmra.mrb[0].mxu0 %v1410
    %v1478 = vpop.f32.mrb[0].mxu0
    %v1479 = vadd.f32 %v120, %v1478
    %v1480 = vpop.f32.mrb[0].mxu0
    %1481 = vdwg.mxu0
    %1482 = vmatprep.subr.mxu0 0.0
    %1483 = vmatpush1.msra.mxu0 %v107
    %1484 = vmatprep.subr.mxu0 0.0
    %1485 = vmatpush1.msra.mxu0 %v108
    %1486 = vmatprep.subr.mxu0 0.0
    %1487 = vmatpush1.msra.mxu0 %v109
    %1488 = vmatprep.subr.mxu0 0.0
    %1489 = vmatpush1.msra.mxu0 %v110
    %1490 = vmatprep.subr.mxu0 0.0
    %1491 = vmatpush1.msra.mxu0 0.0
    %1492 = vmatprep.subr.mxu0 0.0
    %1493 = vmatpush1.msra.mxu0 0.0
    %1494 = vmatprep.subr.mxu0 0.0
    %1495 = vmatpush1.msra.mxu0 0.0
    %1496 = vmatprep.subr.mxu0 0.0
    %1497 = vmatpush1.msra.mxu0 0.0
    %1498 = vmatprep.subr.mxu0 0.0
    %1499 = vmatpush1.msra.mxu0 0.0
    %1500 = vmatprep.subr.mxu0 0.0
    %1501 = vmatpush1.msra.mxu0 0.0
    %1502 = vmatprep.subr.mxu0 0.0
    %1503 = vmatpush1.msra.mxu0 0.0
    %1504 = vmatprep.subr.mxu0 0.0
    %1505 = vmatpush1.msra.mxu0 0.0
    %1506 = vmatprep.subr.mxu0 0.0
    %1507 = vmatpush1.msra.mxu0 0.0
    %1508 = vmatprep.subr.mxu0 0.0
    %1509 = vmatpush1.msra.mxu0 0.0
    %1510 = vmatprep.subr.mxu0 0.0
    %1511 = vmatpush1.msra.mxu0 0.0
    %1512 = vmatprep.subr.mxu0 0.0
    %1513 = vmatpush1.msra.mxu0 0.0
    %1514 = vmatprep.subr.mxu0 0.0
    %1515 = vmatpush1.msra.mxu0 0.0
    %1516 = vmatprep.subr.mxu0 0.0
    %1517 = vmatpush1.msra.mxu0 0.0
    %1518 = vmatprep.subr.mxu0 0.0
    %1519 = vmatpush1.msra.mxu0 0.0
    %1520 = vmatprep.subr.mxu0 0.0
    %1521 = vmatpush1.msra.mxu0 0.0
    %1522 = vmatprep.subr.mxu0 0.0
    %1523 = vmatpush1.msra.mxu0 0.0
    %1524 = vmatprep.subr.mxu0 0.0
    %1525 = vmatpush1.msra.mxu0 0.0
    %1526 = vmatprep.subr.mxu0 0.0
    %1527 = vmatpush1.msra.mxu0 0.0
    %1528 = vmatprep.subr.mxu0 0.0
    %1529 = vmatpush1.msra.mxu0 0.0
    %1530 = vmatprep.subr.mxu0 0.0
    %1531 = vmatpush1.msra.mxu0 0.0
    %1532 = vmatprep.subr.mxu0 0.0
    %1533 = vmatpush1.msra.mxu0 0.0
    %1534 = vmatprep.subr.mxu0 0.0
    %1535 = vmatpush1.msra.mxu0 0.0
    %1536 = vmatprep.subr.mxu0 0.0
    %1537 = vmatpush1.msra.mxu0 0.0
    %1538 = vmatprep.subr.mxu0 0.0
    %1539 = vmatpush1.msra.mxu0 0.0
    %1540 = vmatprep.subr.mxu0 0.0
    %1541 = vmatpush1.msra.mxu0 0.0
    %1542 = vmatprep.subr.mxu0 0.0
    %1543 = vmatpush1.msra.mxu0 0.0
    %1544 = vmatprep.subr.mxu0 0.0
    %1545 = vmatpush1.msra.mxu0 0.0
    %1546 = vmatprep.mubr.f32.mxu0 0.0
    %1547 = vmatmul.mubr.f32.gmra.mrb[0].mxu0 %v1328
    %v1548 = vpop.f32.mrb[0].mxu0
    %v1549 = vadd.f32 %v127, %v1548
    %v1550 = vpop.f32.mrb[0].mxu0
    %1551 = vdwg.mxu0
    %v1552 = vadd.f32 %v1479, %v1549
    %v1553 = vxor.u32 %v1552, 2147483648
    %v1554 = vmul.f32 %v1553, 1.442695
    %v1555 = vpow.pop %v1554
    %v1556 = vadd.f32 %v1555, 1.0
    %v1557 = vrcp.pop %v1556
    %v1558 = vmul.f32 1.0, %v1557
    %1560 = vrot.lane.b32.xlu0 %v1549, 64
    %v1561 = vpop.permute.xlu0 %1560
    %v1563 = vmul.f32 %v1558, %v1561
    %1565 = vrot.lane.b32.xlu0 %v1563, 64
    %v1566 = vpop.permute.xlu0 %1565
    %v1568 = vadd.f32 %v1479, %v1566
    %v1569 = vtanh.pop %v1568
    %v1570 = vsub.f32 1.0, %v1558
    %1572 = vrot.lane.b32.xlu0 %v1569, 96
    %v1573 = vpop.permute.xlu0 %1572
    %v1575 = vmul.f32 %v1570, %v1573
    %v1576 = vmul.f32 %v1558, %v1324
    %v1577 = vadd.f32 %v1575, %v1576
    %1579 = vrot.lane.b32.xlu0 %v1577, 96
    %v1580 = vpop.permute.xlu0 %1579
    %v1581 = vsel %vm212, %v1580, 0
    %1583 = vmatprep.subr.mxu0 0.0
    %1584 = vmatpush1.msra.mxu0 %v111
    %1585 = vmatprep.subr.mxu0 0.0
    %1586 = vmatpush1.msra.mxu0 %v112
    %1587 = vmatprep.subr.mxu0 0.0
    %1588 = vmatpush1.msra.mxu0 %v113
    %1589 = vmatprep.subr.mxu0 0.0
    %1590 = vmatpush1.msra.mxu0 %v114
    %1591 = vmatprep.subr.mxu0 0.0
    %1592 = vmatpush1.msra.mxu0 0.0
    %1593 = vmatprep.subr.mxu0 0.0
    %1594 = vmatpush1.msra.mxu0 0.0
    %1595 = vmatprep.subr.mxu0 0.0
    %1596 = vmatpush1.msra.mxu0 0.0
    %1597 = vmatprep.subr.mxu0 0.0
    %1598 = vmatpush1.msra.mxu0 0.0
    %1599 = vmatprep.subr.mxu0 0.0
    %1600 = vmatpush1.msra.mxu0 0.0
    %1601 = vmatprep.subr.mxu0 0.0
    %1602 = vmatpush1.msra.mxu0 0.0
    %1603 = vmatprep.subr.mxu0 0.0
    %1604 = vmatpush1.msra.mxu0 0.0
    %1605 = vmatprep.subr.mxu0 0.0
    %1606 = vmatpush1.msra.mxu0 0.0
    %1607 = vmatprep.subr.mxu0 0.0
    %1608 = vmatpush1.msra.mxu0 0.0
    %1609 = vmatprep.subr.mxu0 0.0
    %1610 = vmatpush1.msra.mxu0 0.0
    %1611 = vmatprep.subr.mxu0 0.0
    %1612 = vmatpush1.msra.mxu0 0.0
    %1613 = vmatprep.subr.mxu0 0.0
    %1614 = vmatpush1.msra.mxu0 0.0
    %1615 = vmatprep.subr.mxu0 0.0
    %1616 = vmatpush1.msra.mxu0 0.0
    %1617 = vmatprep.subr.mxu0 0.0
    %1618 = vmatpush1.msra.mxu0 0.0
    %1619 = vmatprep.subr.mxu0 0.0
    %1620 = vmatpush1.msra.mxu0 0.0
    %1621 = vmatprep.subr.mxu0 0.0
    %1622 = vmatpush1.msra.mxu0 0.0
    %1623 = vmatprep.subr.mxu0 0.0
    %1624 = vmatpush1.msra.mxu0 0.0
    %1625 = vmatprep.subr.mxu0 0.0
    %1626 = vmatpush1.msra.mxu0 0.0
    %1627 = vmatprep.subr.mxu0 0.0
    %1628 = vmatpush1.msra.mxu0 0.0
    %1629 = vmatprep.subr.mxu0 0.0
    %1630 = vmatpush1.msra.mxu0 0.0
    %1631 = vmatprep.subr.mxu0 0.0
    %1632 = vmatpush1.msra.mxu0 0.0
    %1633 = vmatprep.subr.mxu0 0.0
    %1634 = vmatpush1.msra.mxu0 0.0
    %1635 = vmatprep.subr.mxu0 0.0
    %1636 = vmatpush1.msra.mxu0 0.0
    %1637 = vmatprep.subr.mxu0 0.0
    %1638 = vmatpush1.msra.mxu0 0.0
    %1639 = vmatprep.subr.mxu0 0.0
    %1640 = vmatpush1.msra.mxu0 0.0
    %1641 = vmatprep.subr.mxu0 0.0
    %1642 = vmatpush1.msra.mxu0 0.0
    %1643 = vmatprep.subr.mxu0 0.0
    %1644 = vmatpush1.msra.mxu0 0.0
    %1645 = vmatprep.subr.mxu0 0.0
    %1646 = vmatpush1.msra.mxu0 0.0
    %1647 = vmatprep.mubr.f32.mxu0 0.0
    %1648 = vmatmul.mubr.f32.gmra.mrb[0].mxu0 %v1581
    %v1649 = vpop.f32.mrb[0].mxu0
    %v1650 = vadd.f32 0.0, %v1649
    %v1651 = vpop.f32.mrb[0].mxu0
    %1652 = vdwg.mxu0
    %v1653 = vadd.f32 %v1408, %v1650
    %v1654 = vadd.f32 %v1653, %v134
    %s1655 = scalar_lea.vmem [#allocation11], 40
    %1656 = vst.msk [vmem:[%s1655] sm:$0xff] %vm138, %v1654
    %s1658 = scalar_lea.vmem [#allocation12], 40
    %1659 = vst.msk [vmem:[%s1658] sm:$0xff] %vm212, %v1580
    %s1660 = scalar_lea.vmem [#allocation5], 48
    %v1661 = vld [vmem:[%s1660] sm:$0xff]
    %v1663 = vsel %vm138, %v1661, 0
    %1665 = vmatprep.subr.mxu0 0.0
    %1666 = vmatpush1.msra.mxu0 %v99
    %1667 = vmatprep.subr.mxu0 0.0
    %1668 = vmatpush1.msra.mxu0 %v100
    %1669 = vmatprep.subr.mxu0 0.0
    %1670 = vmatpush1.msra.mxu0 %v101
    %1671 = vmatprep.subr.mxu0 0.0
    %1672 = vmatpush1.msra.mxu0 %v102
    %1673 = vmatprep.subr.mxu0 0.0
    %1674 = vmatpush1.msra.mxu0 %v103
    %1675 = vmatprep.subr.mxu0 0.0
    %1676 = vmatpush1.msra.mxu0 %v104
    %1677 = vmatprep.subr.mxu0 0.0
    %1678 = vmatpush1.msra.mxu0 %v105
    %1679 = vmatprep.subr.mxu0 0.0
    %1680 = vmatpush1.msra.mxu0 %v106
    %1681 = vmatprep.subr.mxu0 0.0
    %1682 = vmatpush1.msra.mxu0 0.0
    %1683 = vmatprep.subr.mxu0 0.0
    %1684 = vmatpush1.msra.mxu0 0.0
    %1685 = vmatprep.subr.mxu0 0.0
    %1686 = vmatpush1.msra.mxu0 0.0
    %1687 = vmatprep.subr.mxu0 0.0
    %1688 = vmatpush1.msra.mxu0 0.0
    %1689 = vmatprep.subr.mxu0 0.0
    %1690 = vmatpush1.msra.mxu0 0.0
    %1691 = vmatprep.subr.mxu0 0.0
    %1692 = vmatpush1.msra.mxu0 0.0
    %1693 = vmatprep.subr.mxu0 0.0
    %1694 = vmatpush1.msra.mxu0 0.0
    %1695 = vmatprep.subr.mxu0 0.0
    %1696 = vmatpush1.msra.mxu0 0.0
    %1697 = vmatprep.subr.mxu0 0.0
    %1698 = vmatpush1.msra.mxu0 0.0
    %1699 = vmatprep.subr.mxu0 0.0
    %1700 = vmatpush1.msra.mxu0 0.0
    %1701 = vmatprep.subr.mxu0 0.0
    %1702 = vmatpush1.msra.mxu0 0.0
    %1703 = vmatprep.subr.mxu0 0.0
    %1704 = vmatpush1.msra.mxu0 0.0
    %1705 = vmatprep.subr.mxu0 0.0
    %1706 = vmatpush1.msra.mxu0 0.0
    %1707 = vmatprep.subr.mxu0 0.0
    %1708 = vmatpush1.msra.mxu0 0.0
    %1709 = vmatprep.subr.mxu0 0.0
    %1710 = vmatpush1.msra.mxu0 0.0
    %1711 = vmatprep.subr.mxu0 0.0
    %1712 = vmatpush1.msra.mxu0 0.0
    %1713 = vmatprep.subr.mxu0 0.0
    %1714 = vmatpush1.msra.mxu0 0.0
    %1715 = vmatprep.subr.mxu0 0.0
    %1716 = vmatpush1.msra.mxu0 0.0
    %1717 = vmatprep.subr.mxu0 0.0
    %1718 = vmatpush1.msra.mxu0 0.0
    %1719 = vmatprep.subr.mxu0 0.0
    %1720 = vmatpush1.msra.mxu0 0.0
    %1721 = vmatprep.subr.mxu0 0.0
    %1722 = vmatpush1.msra.mxu0 0.0
    %1723 = vmatprep.subr.mxu0 0.0
    %1724 = vmatpush1.msra.mxu0 0.0
    %1725 = vmatprep.subr.mxu0 0.0
    %1726 = vmatpush1.msra.mxu0 0.0
    %1727 = vmatprep.subr.mxu0 0.0
    %1728 = vmatpush1.msra.mxu0 0.0
    %1729 = vmatprep.mubr.f32.mxu0 0.0
    %1730 = vmatmul.mubr.f32.gmra.mrb[0].mxu0 %v1663
    %v1731 = vpop.f32.mrb[0].mxu0
    %v1732 = vadd.f32 %v120, %v1731
    %v1733 = vpop.f32.mrb[0].mxu0
    %1734 = vdwg.mxu0
    %1735 = vmatprep.subr.mxu0 0.0
    %1736 = vmatpush1.msra.mxu0 %v107
    %1737 = vmatprep.subr.mxu0 0.0
    %1738 = vmatpush1.msra.mxu0 %v108
    %1739 = vmatprep.subr.mxu0 0.0
    %1740 = vmatpush1.msra.mxu0 %v109
    %1741 = vmatprep.subr.mxu0 0.0
    %1742 = vmatpush1.msra.mxu0 %v110
    %1743 = vmatprep.subr.mxu0 0.0
    %1744 = vmatpush1.msra.mxu0 0.0
    %1745 = vmatprep.subr.mxu0 0.0
    %1746 = vmatpush1.msra.mxu0 0.0
    %1747 = vmatprep.subr.mxu0 0.0
    %1748 = vmatpush1.msra.mxu0 0.0
    %1749 = vmatprep.subr.mxu0 0.0
    %1750 = vmatpush1.msra.mxu0 0.0
    %1751 = vmatprep.subr.mxu0 0.0
    %1752 = vmatpush1.msra.mxu0 0.0
    %1753 = vmatprep.subr.mxu0 0.0
    %1754 = vmatpush1.msra.mxu0 0.0
    %1755 = vmatprep.subr.mxu0 0.0
    %1756 = vmatpush1.msra.mxu0 0.0
    %1757 = vmatprep.subr.mxu0 0.0
    %1758 = vmatpush1.msra.mxu0 0.0
    %1759 = vmatprep.subr.mxu0 0.0
    %1760 = vmatpush1.msra.mxu0 0.0
    %1761 = vmatprep.subr.mxu0 0.0
    %1762 = vmatpush1.msra.mxu0 0.0
    %1763 = vmatprep.subr.mxu0 0.0
    %1764 = vmatpush1.msra.mxu0 0.0
    %1765 = vmatprep.subr.mxu0 0.0
    %1766 = vmatpush1.msra.mxu0 0.0
    %1767 = vmatprep.subr.mxu0 0.0
    %1768 = vmatpush1.msra.mxu0 0.0
    %1769 = vmatprep.subr.mxu0 0.0
    %1770 = vmatpush1.msra.mxu0 0.0
    %1771 = vmatprep.subr.mxu0 0.0
    %1772 = vmatpush1.msra.mxu0 0.0
    %1773 = vmatprep.subr.mxu0 0.0
    %1774 = vmatpush1.msra.mxu0 0.0
    %1775 = vmatprep.subr.mxu0 0.0
    %1776 = vmatpush1.msra.mxu0 0.0
    %1777 = vmatprep.subr.mxu0 0.0
    %1778 = vmatpush1.msra.mxu0 0.0
    %1779 = vmatprep.subr.mxu0 0.0
    %1780 = vmatpush1.msra.mxu0 0.0
    %1781 = vmatprep.subr.mxu0 0.0
    %1782 = vmatpush1.msra.mxu0 0.0
    %1783 = vmatprep.subr.mxu0 0.0
    %1784 = vmatpush1.msra.mxu0 0.0
    %1785 = vmatprep.subr.mxu0 0.0
    %1786 = vmatpush1.msra.mxu0 0.0
    %1787 = vmatprep.subr.mxu0 0.0
    %1788 = vmatpush1.msra.mxu0 0.0
    %1789 = vmatprep.subr.mxu0 0.0
    %1790 = vmatpush1.msra.mxu0 0.0
    %1791 = vmatprep.subr.mxu0 0.0
    %1792 = vmatpush1.msra.mxu0 0.0
    %1793 = vmatprep.subr.mxu0 0.0
    %1794 = vmatpush1.msra.mxu0 0.0
    %1795 = vmatprep.subr.mxu0 0.0
    %1796 = vmatpush1.msra.mxu0 0.0
    %1797 = vmatprep.subr.mxu0 0.0
    %1798 = vmatpush1.msra.mxu0 0.0
    %1799 = vmatprep.mubr.f32.mxu0 0.0
    %1800 = vmatmul.mubr.f32.gmra.mrb[0].mxu0 %v1581
    %v1801 = vpop.f32.mrb[0].mxu0
    %v1802 = vadd.f32 %v127, %v1801
    %v1803 = vpop.f32.mrb[0].mxu0
    %1804 = vdwg.mxu0
    %v1805 = vadd.f32 %v1732, %v1802
    %v1806 = vxor.u32 %v1805, 2147483648
    %v1807 = vmul.f32 %v1806, 1.442695
    %v1808 = vpow.pop %v1807
    %v1809 = vadd.f32 %v1808, 1.0
    %v1810 = vrcp.pop %v1809
    %v1811 = vmul.f32 1.0, %v1810
    %1813 = vrot.lane.b32.xlu0 %v1802, 64
    %v1814 = vpop.permute.xlu0 %1813
    %v1816 = vmul.f32 %v1811, %v1814
    %1818 = vrot.lane.b32.xlu0 %v1816, 64
    %v1819 = vpop.permute.xlu0 %1818
    %v1821 = vadd.f32 %v1732, %v1819
    %v1822 = vtanh.pop %v1821
    %v1823 = vsub.f32 1.0, %v1811
    %1825 = vrot.lane.b32.xlu0 %v1822, 96
    %v1826 = vpop.permute.xlu0 %1825
    %v1828 = vmul.f32 %v1823, %v1826
    %v1829 = vmul.f32 %v1811, %v1577
    %v1830 = vadd.f32 %v1828, %v1829
    %1832 = vrot.lane.b32.xlu0 %v1830, 96
    %v1833 = vpop.permute.xlu0 %1832
    %v1834 = vsel %vm212, %v1833, 0
    %1836 = vmatprep.subr.mxu0 0.0
    %1837 = vmatpush1.msra.mxu0 %v111
    %1838 = vmatprep.subr.mxu0 0.0
    %1839 = vmatpush1.msra.mxu0 %v112
    %1840 = vmatprep.subr.mxu0 0.0
    %1841 = vmatpush1.msra.mxu0 %v113
    %1842 = vmatprep.subr.mxu0 0.0
    %1843 = vmatpush1.msra.mxu0 %v114
    %1844 = vmatprep.subr.mxu0 0.0
    %1845 = vmatpush1.msra.mxu0 0.0
    %1846 = vmatprep.subr.mxu0 0.0
    %1847 = vmatpush1.msra.mxu0 0.0
    %1848 = vmatprep.subr.mxu0 0.0
    %1849 = vmatpush1.msra.mxu0 0.0
    %1850 = vmatprep.subr.mxu0 0.0
    %1851 = vmatpush1.msra.mxu0 0.0
    %1852 = vmatprep.subr.mxu0 0.0
    %1853 = vmatpush1.msra.mxu0 0.0
    %1854 = vmatprep.subr.mxu0 0.0
    %1855 = vmatpush1.msra.mxu0 0.0
    %1856 = vmatprep.subr.mxu0 0.0
    %1857 = vmatpush1.msra.mxu0 0.0
    %1858 = vmatprep.subr.mxu0 0.0
    %1859 = vmatpush1.msra.mxu0 0.0
    %1860 = vmatprep.subr.mxu0 0.0
    %1861 = vmatpush1.msra.mxu0 0.0
    %1862 = vmatprep.subr.mxu0 0.0
    %1863 = vmatpush1.msra.mxu0 0.0
    %1864 = vmatprep.subr.mxu0 0.0
    %1865 = vmatpush1.msra.mxu0 0.0
    %1866 = vmatprep.subr.mxu0 0.0
    %1867 = vmatpush1.msra.mxu0 0.0
    %1868 = vmatprep.subr.mxu0 0.0
    %1869 = vmatpush1.msra.mxu0 0.0
    %1870 = vmatprep.subr.mxu0 0.0
    %1871 = vmatpush1.msra.mxu0 0.0
    %1872 = vmatprep.subr.mxu0 0.0
    %1873 = vmatpush1.msra.mxu0 0.0
    %1874 = vmatprep.subr.mxu0 0.0
    %1875 = vmatpush1.msra.mxu0 0.0
    %1876 = vmatprep.subr.mxu0 0.0
    %1877 = vmatpush1.msra.mxu0 0.0
    %1878 = vmatprep.subr.mxu0 0.0
    %1879 = vmatpush1.msra.mxu0 0.0
    %1880 = vmatprep.subr.mxu0 0.0
    %1881 = vmatpush1.msra.mxu0 0.0
    %1882 = vmatprep.subr.mxu0 0.0
    %1883 = vmatpush1.msra.mxu0 0.0
    %1884 = vmatprep.subr.mxu0 0.0
    %1885 = vmatpush1.msra.mxu0 0.0
    %1886 = vmatprep.subr.mxu0 0.0
    %1887 = vmatpush1.msra.mxu0 0.0
    %1888 = vmatprep.subr.mxu0 0.0
    %1889 = vmatpush1.msra.mxu0 0.0
    %1890 = vmatprep.subr.mxu0 0.0
    %1891 = vmatpush1.msra.mxu0 0.0
    %1892 = vmatprep.subr.mxu0 0.0
    %1893 = vmatpush1.msra.mxu0 0.0
    %1894 = vmatprep.subr.mxu0 0.0
    %1895 = vmatpush1.msra.mxu0 0.0
    %1896 = vmatprep.subr.mxu0 0.0
    %1897 = vmatpush1.msra.mxu0 0.0
    %1898 = vmatprep.subr.mxu0 0.0
    %1899 = vmatpush1.msra.mxu0 0.0
    %1900 = vmatprep.mubr.f32.mxu0 0.0
    %1901 = vmatmul.mubr.f32.gmra.mrb[0].mxu0 %v1834
    %v1902 = vpop.f32.mrb[0].mxu0
    %v1903 = vadd.f32 0.0, %v1902
    %v1904 = vpop.f32.mrb[0].mxu0
    %1905 = vdwg.mxu0
    %v1906 = vadd.f32 %v1661, %v1903
    %v1907 = vadd.f32 %v1906, %v134
    %s1908 = scalar_lea.vmem [#allocation11], 48
    %1909 = vst.msk [vmem:[%s1908] sm:$0xff] %vm138, %v1907
    %s1911 = scalar_lea.vmem [#allocation12], 48
    %1912 = vst.msk [vmem:[%s1911] sm:$0xff] %vm212, %v1833
    %s1913 = scalar_lea.vmem [#allocation5], 56
    %v1914 = vld [vmem:[%s1913] sm:$0xff]
    %v1916 = vsel %vm138, %v1914, 0
    %1918 = vmatprep.subr.mxu0 0.0
    %1919 = vmatpush1.msra.mxu0 %v99
    %1920 = vmatprep.subr.mxu0 0.0
    %1921 = vmatpush1.msra.mxu0 %v100
    %1922 = vmatprep.subr.mxu0 0.0
    %1923 = vmatpush1.msra.mxu0 %v101
    %1924 = vmatprep.subr.mxu0 0.0
    %1925 = vmatpush1.msra.mxu0 %v102
    %1926 = vmatprep.subr.mxu0 0.0
    %1927 = vmatpush1.msra.mxu0 %v103
    %1928 = vmatprep.subr.mxu0 0.0
    %1929 = vmatpush1.msra.mxu0 %v104
    %1930 = vmatprep.subr.mxu0 0.0
    %1931 = vmatpush1.msra.mxu0 %v105
    %1932 = vmatprep.subr.mxu0 0.0
    %1933 = vmatpush1.msra.mxu0 %v106
    %1934 = vmatprep.subr.mxu0 0.0
    %1935 = vmatpush1.msra.mxu0 0.0
    %1936 = vmatprep.subr.mxu0 0.0
    %1937 = vmatpush1.msra.mxu0 0.0
    %1938 = vmatprep.subr.mxu0 0.0
    %1939 = vmatpush1.msra.mxu0 0.0
    %1940 = vmatprep.subr.mxu0 0.0
    %1941 = vmatpush1.msra.mxu0 0.0
    %1942 = vmatprep.subr.mxu0 0.0
    %1943 = vmatpush1.msra.mxu0 0.0
    %1944 = vmatprep.subr.mxu0 0.0
    %1945 = vmatpush1.msra.mxu0 0.0
    %1946 = vmatprep.subr.mxu0 0.0
    %1947 = vmatpush1.msra.mxu0 0.0
    %1948 = vmatprep.subr.mxu0 0.0
    %1949 = vmatpush1.msra.mxu0 0.0
    %1950 = vmatprep.subr.mxu0 0.0
    %1951 = vmatpush1.msra.mxu0 0.0
    %1952 = vmatprep.subr.mxu0 0.0
    %1953 = vmatpush1.msra.mxu0 0.0
    %1954 = vmatprep.subr.mxu0 0.0
    %1955 = vmatpush1.msra.mxu0 0.0
    %1956 = vmatprep.subr.mxu0 0.0
    %1957 = vmatpush1.msra.mxu0 0.0
    %1958 = vmatprep.subr.mxu0 0.0
    %1959 = vmatpush1.msra.mxu0 0.0
    %1960 = vmatprep.subr.mxu0 0.0
    %1961 = vmatpush1.msra.mxu0 0.0
    %1962 = vmatprep.subr.mxu0 0.0
    %1963 = vmatpush1.msra.mxu0 0.0
    %1964 = vmatprep.subr.mxu0 0.0
    %1965 = vmatpush1.msra.mxu0 0.0
    %1966 = vmatprep.subr.mxu0 0.0
    %1967 = vmatpush1.msra.mxu0 0.0
    %1968 = vmatprep.subr.mxu0 0.0
    %1969 = vmatpush1.msra.mxu0 0.0
    %1970 = vmatprep.subr.mxu0 0.0
    %1971 = vmatpush1.msra.mxu0 0.0
    %1972 = vmatprep.subr.mxu0 0.0
    %1973 = vmatpush1.msra.mxu0 0.0
    %1974 = vmatprep.subr.mxu0 0.0
    %1975 = vmatpush1.msra.mxu0 0.0
    %1976 = vmatprep.subr.mxu0 0.0
    %1977 = vmatpush1.msra.mxu0 0.0
    %1978 = vmatprep.subr.mxu0 0.0
    %1979 = vmatpush1.msra.mxu0 0.0
    %1980 = vmatprep.subr.mxu0 0.0
    %1981 = vmatpush1.msra.mxu0 0.0
    %1982 = vmatprep.mubr.f32.mxu0 0.0
    %1983 = vmatmul.mubr.f32.gmra.mrb[0].mxu0 %v1916
    %v1984 = vpop.f32.mrb[0].mxu0
    %v1985 = vadd.f32 %v120, %v1984
    %v1986 = vpop.f32.mrb[0].mxu0
    %1987 = vdwg.mxu0
    %1988 = vmatprep.subr.mxu0 0.0
    %1989 = vmatpush1.msra.mxu0 %v107
    %1990 = vmatprep.subr.mxu0 0.0
    %1991 = vmatpush1.msra.mxu0 %v108
    %1992 = vmatprep.subr.mxu0 0.0
    %1993 = vmatpush1.msra.mxu0 %v109
    %1994 = vmatprep.subr.mxu0 0.0
    %1995 = vmatpush1.msra.mxu0 %v110
    %1996 = vmatprep.subr.mxu0 0.0
    %1997 = vmatpush1.msra.mxu0 0.0
    %1998 = vmatprep.subr.mxu0 0.0
    %1999 = vmatpush1.msra.mxu0 0.0
    %2000 = vmatprep.subr.mxu0 0.0
    %2001 = vmatpush1.msra.mxu0 0.0
    %2002 = vmatprep.subr.mxu0 0.0
    %2003 = vmatpush1.msra.mxu0 0.0
    %2004 = vmatprep.subr.mxu0 0.0
    %2005 = vmatpush1.msra.mxu0 0.0
    %2006 = vmatprep.subr.mxu0 0.0
    %2007 = vmatpush1.msra.mxu0 0.0
    %2008 = vmatprep.subr.mxu0 0.0
    %2009 = vmatpush1.msra.mxu0 0.0
    %2010 = vmatprep.subr.mxu0 0.0
    %2011 = vmatpush1.msra.mxu0 0.0
    %2012 = vmatprep.subr.mxu0 0.0
    %2013 = vmatpush1.msra.mxu0 0.0
    %2014 = vmatprep.subr.mxu0 0.0
    %2015 = vmatpush1.msra.mxu0 0.0
    %2016 = vmatprep.subr.mxu0 0.0
    %2017 = vmatpush1.msra.mxu0 0.0
    %2018 = vmatprep.subr.mxu0 0.0
    %2019 = vmatpush1.msra.mxu0 0.0
    %2020 = vmatprep.subr.mxu0 0.0
    %2021 = vmatpush1.msra.mxu0 0.0
    %2022 = vmatprep.subr.mxu0 0.0
    %2023 = vmatpush1.msra.mxu0 0.0
    %2024 = vmatprep.subr.mxu0 0.0
    %2025 = vmatpush1.msra.mxu0 0.0
    %2026 = vmatprep.subr.mxu0 0.0
    %2027 = vmatpush1.msra.mxu0 0.0
    %2028 = vmatprep.subr.mxu0 0.0
    %2029 = vmatpush1.msra.mxu0 0.0
    %2030 = vmatprep.subr.mxu0 0.0
    %2031 = vmatpush1.msra.mxu0 0.0
    %2032 = vmatprep.subr.mxu0 0.0
    %2033 = vmatpush1.msra.mxu0 0.0
    %2034 = vmatprep.subr.mxu0 0.0
    %2035 = vmatpush1.msra.mxu0 0.0
    %2036 = vmatprep.subr.mxu0 0.0
    %2037 = vmatpush1.msra.mxu0 0.0
    %2038 = vmatprep.subr.mxu0 0.0
    %2039 = vmatpush1.msra.mxu0 0.0
    %2040 = vmatprep.subr.mxu0 0.0
    %2041 = vmatpush1.msra.mxu0 0.0
    %2042 = vmatprep.subr.mxu0 0.0
    %2043 = vmatpush1.msra.mxu0 0.0
    %2044 = vmatprep.subr.mxu0 0.0
    %2045 = vmatpush1.msra.mxu0 0.0
    %2046 = vmatprep.subr.mxu0 0.0
    %2047 = vmatpush1.msra.mxu0 0.0
    %2048 = vmatprep.subr.mxu0 0.0
    %2049 = vmatpush1.msra.mxu0 0.0
    %2050 = vmatprep.subr.mxu0 0.0
    %2051 = vmatpush1.msra.mxu0 0.0
    %2052 = vmatprep.mubr.f32.mxu0 0.0
    %2053 = vmatmul.mubr.f32.gmra.mrb[0].mxu0 %v1834
    %v2054 = vpop.f32.mrb[0].mxu0
    %v2055 = vadd.f32 %v127, %v2054
    %v2056 = vpop.f32.mrb[0].mxu0
    %2057 = vdwg.mxu0
    %v2058 = vadd.f32 %v1985, %v2055
    %v2059 = vxor.u32 %v2058, 2147483648
    %v2060 = vmul.f32 %v2059, 1.442695
    %v2061 = vpow.pop %v2060
    %v2062 = vadd.f32 %v2061, 1.0
    %v2063 = vrcp.pop %v2062
    %v2064 = vmul.f32 1.0, %v2063
    %2066 = vrot.lane.b32.xlu0 %v2055, 64
    %v2067 = vpop.permute.xlu0 %2066
    %v2069 = vmul.f32 %v2064, %v2067
    %2071 = vrot.lane.b32.xlu0 %v2069, 64
    %v2072 = vpop.permute.xlu0 %2071
    %v2074 = vadd.f32 %v1985, %v2072
    %v2075 = vtanh.pop %v2074
    %v2076 = vsub.f32 1.0, %v2064
    %2078 = vrot.lane.b32.xlu0 %v2075, 96
    %v2079 = vpop.permute.xlu0 %2078
    %v2081 = vmul.f32 %v2076, %v2079
    %v2082 = vmul.f32 %v2064, %v1830
    %v2083 = vadd.f32 %v2081, %v2082
    %2085 = vrot.lane.b32.xlu0 %v2083, 96
    %v2086 = vpop.permute.xlu0 %2085
    %v2087 = vsel %vm212, %v2086, 0
    %2089 = vmatprep.subr.mxu0 0.0
    %2090 = vmatpush1.msra.mxu0 %v111
    %2091 = vmatprep.subr.mxu0 0.0
    %2092 = vmatpush1.msra.mxu0 %v112
    %2093 = vmatprep.subr.mxu0 0.0
    %2094 = vmatpush1.msra.mxu0 %v113
    %2095 = vmatprep.subr.mxu0 0.0
    %2096 = vmatpush1.msra.mxu0 %v114
    %2097 = vmatprep.subr.mxu0 0.0
    %2098 = vmatpush1.msra.mxu0 0.0
    %2099 = vmatprep.subr.mxu0 0.0
    %2100 = vmatpush1.msra.mxu0 0.0
    %2101 = vmatprep.subr.mxu0 0.0
    %2102 = vmatpush1.msra.mxu0 0.0
    %2103 = vmatprep.subr.mxu0 0.0
    %2104 = vmatpush1.msra.mxu0 0.0
    %2105 = vmatprep.subr.mxu0 0.0
    %2106 = vmatpush1.msra.mxu0 0.0
    %2107 = vmatprep.subr.mxu0 0.0
    %2108 = vmatpush1.msra.mxu0 0.0
    %2109 = vmatprep.subr.mxu0 0.0
    %2110 = vmatpush1.msra.mxu0 0.0
    %2111 = vmatprep.subr.mxu0 0.0
    %2112 = vmatpush1.msra.mxu0 0.0
    %2113 = vmatprep.subr.mxu0 0.0
    %2114 = vmatpush1.msra.mxu0 0.0
    %2115 = vmatprep.subr.mxu0 0.0
    %2116 = vmatpush1.msra.mxu0 0.0
    %2117 = vmatprep.subr.mxu0 0.0
    %2118 = vmatpush1.msra.mxu0 0.0
    %2119 = vmatprep.subr.mxu0 0.0
    %2120 = vmatpush1.msra.mxu0 0.0
    %2121 = vmatprep.subr.mxu0 0.0
    %2122 = vmatpush1.msra.mxu0 0.0
    %2123 = vmatprep.subr.mxu0 0.0
    %2124 = vmatpush1.msra.mxu0 0.0
    %2125 = vmatprep.subr.mxu0 0.0
    %2126 = vmatpush1.msra.mxu0 0.0
    %2127 = vmatprep.subr.mxu0 0.0
    %2128 = vmatpush1.msra.mxu0 0.0
    %2129 = vmatprep.subr.mxu0 0.0
    %2130 = vmatpush1.msra.mxu0 0.0
    %2131 = vmatprep.subr.mxu0 0.0
    %2132 = vmatpush1.msra.mxu0 0.0
    %2133 = vmatprep.subr.mxu0 0.0
    %2134 = vmatpush1.msra.mxu0 0.0
    %2135 = vmatprep.subr.mxu0 0.0
    %2136 = vmatpush1.msra.mxu0 0.0
    %2137 = vmatprep.subr.mxu0 0.0
    %2138 = vmatpush1.msra.mxu0 0.0
    %2139 = vmatprep.subr.mxu0 0.0
    %2140 = vmatpush1.msra.mxu0 0.0
    %2141 = vmatprep.subr.mxu0 0.0
    %2142 = vmatpush1.msra.mxu0 0.0
    %2143 = vmatprep.subr.mxu0 0.0
    %2144 = vmatpush1.msra.mxu0 0.0
    %2145 = vmatprep.subr.mxu0 0.0
    %2146 = vmatpush1.msra.mxu0 0.0
    %2147 = vmatprep.subr.mxu0 0.0
    %2148 = vmatpush1.msra.mxu0 0.0
    %2149 = vmatprep.subr.mxu0 0.0
    %2150 = vmatpush1.msra.mxu0 0.0
    %2151 = vmatprep.subr.mxu0 0.0
    %2152 = vmatpush1.msra.mxu0 0.0
    %2153 = vmatprep.mubr.f32.mxu0 0.0
    %2154 = vmatmul.mubr.f32.gmra.mrb[0].mxu0 %v2087
    %v2155 = vpop.f32.mrb[0].mxu0
    %v2156 = vadd.f32 0.0, %v2155
    %v2157 = vpop.f32.mrb[0].mxu0
    %2158 = vdwg.mxu0
    %v2159 = vadd.f32 %v1914, %v2156
    %v2160 = vadd.f32 %v2159, %v134
    %s2161 = scalar_lea.vmem [#allocation11], 56
    %2162 = vst.msk [vmem:[%s2161] sm:$0xff] %vm138, %v2160
    %s2164 = scalar_lea.vmem [#allocation12], 56
    %2165 = vst.msk [vmem:[%s2164] sm:$0xff] %vm212, %v2086
    // Predicated region
    $region54: #{decoder_cell_sequence.1} parent=1 // pred_check
      _
    $region55: #{decoder_cell_sequence.1} parent=1 // pred_check_branch
      %2167 = sbr.rel (0) target = $region57
    $region56: #{decoder_cell_sequence.1} parent=1 // pred_region
      %s2169 = ssub.s32 1024, 1024
      %2170 = vsyncadd [#allocation4], %s2169
      %s2171 = sshll.u32 [#allocation11], 4
      %s2172 = int_to_ptr.vmem [resolvable:$true] %s2171
      %2177 = dma.vmem_to_hbm [thread:$0]  %s2172, 1024, %s8, [#allocation4], 128, 128, 8
    $region57: #{decoder_cell_sequence.1} parent=1 // pred_fallthru
      _
    // Predicated region
    $region58: #{decoder_cell_sequence.1} parent=1 // pred_check
      _
    $region59: #{decoder_cell_sequence.1} parent=1 // pred_check_branch
      %2179 = sbr.rel (0) target = $region61
    $region60: #{decoder_cell_sequence.1} parent=1 // pred_region
      %s2181 = ssub.s32 1024, 1024
      %2182 = vsyncadd [#allocation13], %s2181
      %s2183 = sshll.u32 [#allocation12], 4
      %s2184 = int_to_ptr.vmem [resolvable:$true] %s2183
      %2189 = dma.vmem_to_hbm [thread:$0]  %s2184, 1024, %s9, [#allocation13], 128, 128, 8
    $region61: #{decoder_cell_sequence.1} parent=1 // pred_fallthru
      _
    // Predicated region
    $region62: #{decoder_cell_sequence.1} parent=1 // pred_check
      _
    $region63: #{decoder_cell_sequence.1} parent=1 // pred_check_branch
      %2191 = sbr.rel (0) target = $region65
    $region64: #{decoder_cell_sequence.1} parent=1 // pred_region
      %2192 = dma.done [#allocation4], 1024
    $region65: #{decoder_cell_sequence.1} parent=1 // pred_fallthru
      _
    // Predicated region
    $region66: #{decoder_cell_sequence.1} parent=1 // pred_check
      _
    $region67: #{decoder_cell_sequence.1} parent=1 // pred_check_branch
      %2194 = sbr.rel (0) target = $region69
    $region68: #{decoder_cell_sequence.1} parent=1 // pred_region
      %2195 = dma.done [#allocation13], 1024
    $region69: #{decoder_cell_sequence.1} parent=1 // pred_fallthru
      _
    %2196 = vsyncpa [#allocation3], 1
    %2197 = vsyncpa [#allocation6], 1
    %2198 = vsyncpa [#allocation9], 1
    %2199 = vsyncpa [#allocation4], 1
    %2200 = vsyncpa [#allocation13], 1

</llo_original>
